<compile_context>
chip_gen: v7x
topology: tpu7x:2x2x1
jax: 0.10.0
libtpu: 0.0.40
codegen_flags: <defaults>
</compile_context>

<pallas_src>
import functools

import jax
import jax.numpy as jnp
from jax import lax
from jax.experimental import pallas as pl
from jax.experimental.pallas import tpu as pltpu


MATMUL_DTYPE = jnp.bfloat16  # MXU operands only; accumulation + elementwise math stay f32


# ----------------------------- fused Pallas kernel ---------------------------

def _lstm_model_kernel(*refs, num_layers, hidden_size, seq_len, batch):
    """Fused multi-layer LSTM (wavefront-interleaved) + FC head.

    refs layout (inputs then output):
      refs[0]                x2d      (T*B, D) time-major, bf16
      refs[1..3]             layer 0: w_ih0 (D, 4H), w_hh0 (H, 4H), b0 (1, 4H)
      refs[4 + 2*(l-1)],
      refs[5 + 2*(l-1)]      layer l>=1: w_l ([w_ih_l; w_hh_l]) (2H, 4H), b_l (1, 4H)
      refs[-3], refs[-2]     fc_w_t (H, O), fc_b (1, O)
      refs[-1]               out (B, O)
    Gate column blocks are in PyTorch order [i, f, g, o]; i/f/o columns are pre-scaled
    by 0.5 so that a single tanh gives all gate nonlinearities.
    """
    H, T, B, L = hidden_size, seq_len, batch, num_layers
    x_ref = refs[0]
    w_ih0_ref, w_hh0_ref, b0_ref = refs[1], refs[2], refs[3]
    idx = 4
    fused_layer_refs = []
    for _ in range(1, L):
        fused_layer_refs.append((refs[idx], refs[idx + 1]))
        idx += 2
    fc_w_ref, fc_b_ref, out_ref = refs[idx], refs[idx + 1], refs[idx + 2]

    # Lane mask selecting the 'g' (cell candidate) block of the fused 4H lanes.
    lane = lax.broadcasted_iota(jnp.int32, (B, 4 * H), 1)
    g_mask = (lane >= 2 * H) & (lane < 3 * H)

    def cell(z, c_prev):
        # i/f/o preactivations were pre-scaled by 0.5 -> sigmoid(x) = 0.5*tanh(x/2) + 0.5.
        t_all = jnp.tanh(z)                                   # ONE EUP transcendental
        gates = jnp.where(g_mask, t_all, 0.5 * t_all + 0.5)   # VALU select + fma
        i_g = gates[:, 0 * H:1 * H]
        f_g = gates[:, 1 * H:2 * H]
        g_g = gates[:, 2 * H:3 * H]
        o_g = gates[:, 3 * H:4 * H]
        c_new = f_g * c_prev + i_g * g_g
        h_new = o_g * jnp.tanh(c_new)
        return h_new, c_new

    # Hoisted layer-0 input projection: one well-shaped MXU matmul for all timesteps.
    x_proj = jnp.dot(x_ref[...], w_ih0_ref[...],
                     preferred_element_type=jnp.float32) + b0_ref[...]     # (T*B, 4H) f32

    w_hh0 = w_hh0_ref[...]
    ws = [w_r[...] for w_r, _ in fused_layer_refs]
    bs = [b_r[...] for _, b_r in fused_layer_refs]

    h = [jnp.zeros((B, H), jnp.float32) for _ in range(L)]
    c = [jnp.zeros((B, H), jnp.float32) for _ in range(L)]

    # Wavefront schedule: layer l at step t depends only on (layer l-1, step t) and
    # (layer l, step t-1) -> critical path is T + L - 1 cell steps.
    for t in range(T):
        z0 = x_proj[t * B:(t + 1) * B, :] + jnp.dot(
            h[0].astype(MATMUL_DTYPE), w_hh0, preferred_element_type=jnp.float32)
        h[0], c[0] = cell(z0, c[0])
        for l in range(1, L):
            lhs = jnp.concatenate(
                [h[l - 1].astype(MATMUL_DTYPE), h[l].astype(MATMUL_DTYPE)], axis=1)  # (B, 2H)
            z = jnp.dot(lhs, ws[l - 1], preferred_element_type=jnp.float32) + bs[l - 1]
            h[l], c[l] = cell(z, c[l])

    # FC head on the top layer's final hidden state (== lstm_out[:, -1, :]).
    out_ref[...] = jnp.dot(h[L - 1].astype(MATMUL_DTYPE), fc_w_ref[...],
                           preferred_element_type=jnp.float32) + fc_b_ref[...]


# --------------------------------- wrapper -----------------------------------

def lstm_model_forward(kparams, x):
    """Pallas forward pass. x: (B, T, D) batch-first (PyTorch layout)."""
    B, T, D = x.shape
    H = kparams["hidden_size"]
    L = kparams["num_layers"]
    O = kparams["fc_w_t"].shape[1]

    # Layout plumbing outside the kernel: time-major flatten + bf16 cast for the MXU.
    x2d = jnp.transpose(x, (1, 0, 2)).reshape(T * B, D).astype(MATMUL_DTYPE)

    inputs = [x2d, kparams["w_ih0"], kparams["w_hh0"], kparams["b0"]]
    for l in range(1, L):
        inputs += [kparams["w_fused"][l - 1], kparams["b_fused"][l - 1]]
    inputs += [kparams["fc_w_t"], kparams["fc_b"]]

    vmem = pl.BlockSpec(memory_space=pltpu.MemorySpace.VMEM)   # full array, VMEM-resident
    kernel = functools.partial(_lstm_model_kernel, num_layers=L,
                               hidden_size=H, seq_len=T, batch=B)
    return pl.pallas_call(
        kernel,
        out_shape=jax.ShapeDtypeStruct((B, O), jnp.float32),
        in_specs=[vmem] * len(inputs),
        out_specs=vmem,
    )(*inputs)


# --------------------------- params (PyTorch layout) --------------------------

def init_params(key, input_size, hidden_size, num_layers, output_size):
    """Deterministic init mirroring PyTorch parameter shapes.

    Per layer l: weight_ih_l (4H, D_in), weight_hh_l (4H, H), bias_ih_l (4H,), bias_hh_l (4H,)
    fc: weight (O, H), bias (O,).  Gate row-block order = [i, f, g, o].
    """
    H = hidden_size
    bound = 1.0 / jnp.sqrt(jnp.float32(H))
    params = {"layers": []}
    for l in range(num_layers):
        d_in = input_size if l == 0 else hidden_size
        key, k1, k2, k3, k4 = jax.random.split(key, 5)
        params["layers"].append({
            "w_ih": jax.random.uniform(k1, (4 * H, d_in), jnp.float32, -bound, bound),
            "w_hh": jax.random.uniform(k2, (4 * H, H), jnp.float32, -bound, bound),
            "b_ih": jax.random.uniform(k3, (4 * H,), jnp.float32, -bound, bound),
            "b_hh": jax.random.uniform(k4, (4 * H,), jnp.float32, -bound, bound),
        })
    key, k5, k6 = jax.random.split(key, 3)
    params["fc_w"] = jax.random.uniform(k5, (output_size, H), jnp.float32, -bound, bound)
    params["fc_b"] = jax.random.uniform(k6, (output_size,), jnp.float32, -bound, bound)
    return params


def prepare_params(params, hidden_size):
    """Convert PyTorch-layout params to kernel layout ONCE.

    - transpose to (in, 4H) so the contraction dim is leading on the RHS,
    - fuse bias_ih + bias_hh,
    - fuse w_ih_l / w_hh_l of layers l>=1 into one (2H, 4H) RHS,
    - pre-scale the i/f/o gate columns by 0.5 (single-tanh trick),
    - cast MXU operands to bf16 (biases stay f32).
    """
    H = hidden_size
    L = len(params["layers"])

    def prescale_ifo(a):  # last dim = 4H, columns [i, f, g, o]
        scale = jnp.concatenate([
            jnp.full((2 * H,), 0.5, jnp.float32),   # i, f
            jnp.ones((H,), jnp.float32),            # g (tanh gate, unscaled)
            jnp.full((H,), 0.5, jnp.float32),       # o
        ])
        return a * scale

    kp = {"hidden_size": H, "num_layers": L, "w_fused": [], "b_fused": []}

    l0 = params["layers"][0]
    kp["w_ih0"] = prescale_ifo(l0["w_ih"].T).astype(MATMUL_DTYPE)              # (D, 4H)
    kp["w_hh0"] = prescale_ifo(l0["w_hh"].T).astype(MATMUL_DTYPE)              # (H, 4H)
    kp["b0"] = prescale_ifo((l0["b_ih"] + l0["b_hh"]).reshape(1, 4 * H))       # f32 (1, 4H)

    for l in range(1, L):
        layer = params["layers"][l]
        w = jnp.concatenate([layer["w_ih"].T, layer["w_hh"].T], axis=0)        # (2H, 4H)
        kp["w_fused"].append(prescale_ifo(w).astype(MATMUL_DTYPE))
        kp["b_fused"].append(
            prescale_ifo((layer["b_ih"] + layer["b_hh"]).reshape(1, 4 * H)))   # f32

    kp["fc_w_t"] = jnp.asarray(params["fc_w"].T, MATMUL_DTYPE)                 # (H, O)
    kp["fc_b"] = jnp.asarray(params["fc_b"].reshape(1, -1), jnp.float32)       # (1, O)
    return kp


# ----------------------------- pure-JAX reference -----------------------------

def lstm_model_reference(params, x, hidden_size):
    H = hidden_size
    h_seq = x
    for layer in params["layers"]:
        B, T, _ = h_seq.shape
        w_ih, w_hh = layer["w_ih"], layer["w_hh"]
        b = layer["b_ih"] + layer["b_hh"]

        def step(carry, x_t):
            h, c = carry
            gates = x_t @ w_ih.T + h @ w_hh.T + b
            i = jax.nn.sigmoid(gates[:, 0:H])
            f = jax.nn.sigmoid(gates[:, H:2 * H])
            g = jnp.tanh(gates[:, 2 * H:3 * H])
            o = jax.nn.sigmoid(gates[:, 3 * H:4 * H])
            c_new = f * c + i * g
            h_new = o * jnp.tanh(c_new)
            return (h_new, c_new), h_new

        init = (jnp.zeros((B, H), jnp.float32), jnp.zeros((B, H), jnp.float32))
        _, hs = lax.scan(step, init, jnp.swapaxes(h_seq, 0, 1))
        h_seq = jnp.swapaxes(hs, 0, 1)
    last = h_seq[:, -1, :]
    return last @ params["fc_w"].T + params["fc_b"]


# --------------------------------- main ---------------------------------------

if __name__ == "__main__":
    input_size = 16
    hidden_size = 32
    num_layers = 2
    output_size = 4
    dropout = 0.0  # eval-mode semantics: identity between layers

    batch = 2
    seq = 8

    key = jax.random.PRNGKey(0)
    pkey, xkey = jax.random.split(key)
    params = init_params(pkey, input_size, hidden_size, num_layers, output_size)
    kparams = prepare_params(params, hidden_size)   # kernel-layout weights, built once
    x = jax.random.normal(xkey, (batch, seq, input_size), jnp.float32)

    out = jax.block_until_ready(lstm_model_forward(kparams, x))

    ref = jax.block_until_ready(lstm_model_reference(params, x, hidden_size))
    assert out.shape == (batch, output_size)
    # bf16 MXU operands (f32 accumulation): relaxed tolerance vs. the pure-f32 reference.
    assert jnp.allclose(out, ref, atol=3e-2, rtol=3e-2), (
        f"Pallas output mismatch vs reference; max abs err = {jnp.max(jnp.abs(out - ref))}")

    print("KERNEL_OK")
</pallas_src>

<mosaic_0001>
module attributes {stable_mosaic.version = 11 : i64} {
  func.func @_lstm_model_kernel(%arg0: memref<16x16xbf16, #tpu.memory_space<vmem>>, %arg1: memref<16x128xbf16, #tpu.memory_space<vmem>>, %arg2: memref<32x128xbf16, #tpu.memory_space<vmem>>, %arg3: memref<1x128xf32, #tpu.memory_space<vmem>>, %arg4: memref<64x128xbf16, #tpu.memory_space<vmem>>, %arg5: memref<1x128xf32, #tpu.memory_space<vmem>>, %arg6: memref<32x4xbf16, #tpu.memory_space<vmem>>, %arg7: memref<1x4xf32, #tpu.memory_space<vmem>>, %arg8: memref<2x4xf32, #tpu.memory_space<vmem>>) attributes {dimension_semantics = [], scalar_prefetch = 0 : i64, scratch_operands = 0 : i64, tpu.core_type = #tpu.core_type<tc>} {
    %0 = tpu.iota {dimensions = array<i32: 1>} : vector<2x128xi32>
    %c64_i32 = arith.constant 64 : i32
    %1 = vector.broadcast %c64_i32 : i32 to vector<2x128xi32>
    %2 = arith.cmpi sge, %0, %1 : vector<2x128xi32>
    %c96_i32 = arith.constant 96 : i32
    %3 = vector.broadcast %c96_i32 : i32 to vector<2x128xi32>
    %4 = arith.cmpi slt, %0, %3 : vector<2x128xi32>
    %5 = arith.andi %2, %4 : vector<2x128xi1>
    %c0 = arith.constant 0 : index
    %c0_0 = arith.constant 0 : index
    %6 = vector.load %arg0[%c0, %c0_0] : memref<16x16xbf16, #tpu.memory_space<vmem>>, vector<16x16xbf16>
    %c0_1 = arith.constant 0 : index
    %c0_2 = arith.constant 0 : index
    %7 = vector.load %arg1[%c0_1, %c0_2] : memref<16x128xbf16, #tpu.memory_space<vmem>>, vector<16x128xbf16>
    %cst = arith.constant dense<0.000000e+00> : vector<16x128xf32>
    %8 = tpu.matmul %6, %7, %cst {dimension_numbers = #tpu.dot_dimension_numbers<[1], [0], [0], [1], [0, 0, 1, 1], [], []>} : vector<16x16xbf16>, vector<16x128xbf16>, vector<16x128xf32> -> vector<16x128xf32>
    %c0_3 = arith.constant 0 : index
    %c0_4 = arith.constant 0 : index
    %9 = vector.load %arg3[%c0_3, %c0_4] : memref<1x128xf32, #tpu.memory_space<vmem>>, vector<1x128xf32>
    %10 = vector.broadcast %9 : vector<1x128xf32> to vector<16x128xf32>
    %11 = arith.addf %8, %10 : vector<16x128xf32>
    %c0_5 = arith.constant 0 : index
    %c0_6 = arith.constant 0 : index
    %12 = vector.load %arg2[%c0_5, %c0_6] : memref<32x128xbf16, #tpu.memory_space<vmem>>, vector<32x128xbf16>
    %c0_7 = arith.constant 0 : index
    %c0_8 = arith.constant 0 : index
    %13 = vector.load %arg4[%c0_7, %c0_8] : memref<64x128xbf16, #tpu.memory_space<vmem>>, vector<64x128xbf16>
    %c0_9 = arith.constant 0 : index
    %c0_10 = arith.constant 0 : index
    %14 = vector.load %arg5[%c0_9, %c0_10] : memref<1x128xf32, #tpu.memory_space<vmem>>, vector<1x128xf32>
    %cst_11 = arith.constant 0.000000e+00 : f32
    %15 = vector.broadcast %cst_11 : f32 to vector<2x32xf32>
    %cst_12 = arith.constant 0.000000e+00 : f32
    %16 = vector.broadcast %cst_12 : f32 to vector<2x32xf32>
    %cst_13 = arith.constant 0.000000e+00 : f32
    %17 = vector.broadcast %cst_13 : f32 to vector<2x32xf32>
    %cst_14 = arith.constant 0.000000e+00 : f32
    %18 = vector.broadcast %cst_14 : f32 to vector<2x32xf32>
    %19 = vector.extract_strided_slice %11 {offsets = [0, 0], sizes = [2, 128], strides = [1, 1]} : vector<16x128xf32> to vector<2x128xf32>
    %20 = arith.truncf %15 : vector<2x32xf32> to vector<2x32xbf16>
    %cst_15 = arith.constant dense<0.000000e+00> : vector<2x128xf32>
    %21 = tpu.matmul %20, %12, %cst_15 {dimension_numbers = #tpu.dot_dimension_numbers<[1], [0], [0], [1], [0, 0, 1, 1], [], []>} : vector<2x32xbf16>, vector<32x128xbf16>, vector<2x128xf32> -> vector<2x128xf32>
    %22 = arith.addf %19, %21 : vector<2x128xf32>
    %23 = math.tanh %22 : vector<2x128xf32>
    %cst_16 = arith.constant 5.000000e-01 : f32
    %24 = vector.broadcast %cst_16 : f32 to vector<2x128xf32>
    %25 = arith.mulf %24, %23 : vector<2x128xf32>
    %cst_17 = arith.constant 5.000000e-01 : f32
    %26 = vector.broadcast %cst_17 : f32 to vector<2x128xf32>
    %27 = arith.addf %25, %26 : vector<2x128xf32>
    %28 = arith.select %5, %23, %27 : vector<2x128xi1>, vector<2x128xf32>
    %29 = vector.extract_strided_slice %28 {offsets = [0, 0], sizes = [2, 32], strides = [1, 1]} : vector<2x128xf32> to vector<2x32xf32>
    %30 = vector.extract_strided_slice %28 {offsets = [0, 32], sizes = [2, 32], strides = [1, 1]} : vector<2x128xf32> to vector<2x32xf32>
    %31 = vector.extract_strided_slice %28 {offsets = [0, 64], sizes = [2, 32], strides = [1, 1]} : vector<2x128xf32> to vector<2x32xf32>
    %32 = vector.extract_strided_slice %28 {offsets = [0, 96], sizes = [2, 32], strides = [1, 1]} : vector<2x128xf32> to vector<2x32xf32>
    %33 = arith.mulf %30, %17 : vector<2x32xf32>
    %34 = arith.mulf %29, %31 : vector<2x32xf32>
    %35 = arith.addf %33, %34 : vector<2x32xf32>
    %36 = math.tanh %35 : vector<2x32xf32>
    %37 = arith.mulf %32, %36 : vector<2x32xf32>
    %38 = arith.truncf %37 : vector<2x32xf32> to vector<2x32xbf16>
    %39 = arith.truncf %16 : vector<2x32xf32> to vector<2x32xbf16>
    %40 = tpu.concatenate %38, %39 in 1 : vector<2x32xbf16>, vector<2x32xbf16> -> vector<2x64xbf16>
    %cst_18 = arith.constant dense<0.000000e+00> : vector<2x128xf32>
    %41 = tpu.matmul %40, %13, %cst_18 {dimension_numbers = #tpu.dot_dimension_numbers<[1], [0], [0], [1], [0, 0, 1, 1], [], []>} : vector<2x64xbf16>, vector<64x128xbf16>, vector<2x128xf32> -> vector<2x128xf32>
    %42 = vector.broadcast %14 : vector<1x128xf32> to vector<2x128xf32>
    %43 = arith.addf %41, %42 : vector<2x128xf32>
    %44 = math.tanh %43 : vector<2x128xf32>
    %cst_19 = arith.constant 5.000000e-01 : f32
    %45 = vector.broadcast %cst_19 : f32 to vector<2x128xf32>
    %46 = arith.mulf %45, %44 : vector<2x128xf32>
    %cst_20 = arith.constant 5.000000e-01 : f32
    %47 = vector.broadcast %cst_20 : f32 to vector<2x128xf32>
    %48 = arith.addf %46, %47 : vector<2x128xf32>
    %49 = arith.select %5, %44, %48 : vector<2x128xi1>, vector<2x128xf32>
    %50 = vector.extract_strided_slice %49 {offsets = [0, 0], sizes = [2, 32], strides = [1, 1]} : vector<2x128xf32> to vector<2x32xf32>
    %51 = vector.extract_strided_slice %49 {offsets = [0, 32], sizes = [2, 32], strides = [1, 1]} : vector<2x128xf32> to vector<2x32xf32>
    %52 = vector.extract_strided_slice %49 {offsets = [0, 64], sizes = [2, 32], strides = [1, 1]} : vector<2x128xf32> to vector<2x32xf32>
    %53 = vector.extract_strided_slice %49 {offsets = [0, 96], sizes = [2, 32], strides = [1, 1]} : vector<2x128xf32> to vector<2x32xf32>
    %54 = arith.mulf %51, %18 : vector<2x32xf32>
    %55 = arith.mulf %50, %52 : vector<2x32xf32>
    %56 = arith.addf %54, %55 : vector<2x32xf32>
    %57 = math.tanh %56 : vector<2x32xf32>
    %58 = arith.mulf %53, %57 : vector<2x32xf32>
    %59 = vector.extract_strided_slice %11 {offsets = [2, 0], sizes = [2, 128], strides = [1, 1]} : vector<16x128xf32> to vector<2x128xf32>
    %60 = arith.truncf %37 : vector<2x32xf32> to vector<2x32xbf16>
    %cst_21 = arith.constant dense<0.000000e+00> : vector<2x128xf32>
    %61 = tpu.matmul %60, %12, %cst_21 {dimension_numbers = #tpu.dot_dimension_numbers<[1], [0], [0], [1], [0, 0, 1, 1], [], []>} : vector<2x32xbf16>, vector<32x128xbf16>, vector<2x128xf32> -> vector<2x128xf32>
    %62 = arith.addf %59, %61 : vector<2x128xf32>
    %63 = math.tanh %62 : vector<2x128xf32>
    %cst_22 = arith.constant 5.000000e-01 : f32
    %64 = vector.broadcast %cst_22 : f32 to vector<2x128xf32>
    %65 = arith.mulf %64, %63 : vector<2x128xf32>
    %cst_23 = arith.constant 5.000000e-01 : f32
    %66 = vector.broadcast %cst_23 : f32 to vector<2x128xf32>
    %67 = arith.addf %65, %66 : vector<2x128xf32>
    %68 = arith.select %5, %63, %67 : vector<2x128xi1>, vector<2x128xf32>
    %69 = vector.extract_strided_slice %68 {offsets = [0, 0], sizes = [2, 32], strides = [1, 1]} : vector<2x128xf32> to vector<2x32xf32>
    %70 = vector.extract_strided_slice %68 {offsets = [0, 32], sizes = [2, 32], strides = [1, 1]} : vector<2x128xf32> to vector<2x32xf32>
    %71 = vector.extract_strided_slice %68 {offsets = [0, 64], sizes = [2, 32], strides = [1, 1]} : vector<2x128xf32> to vector<2x32xf32>
    %72 = vector.extract_strided_slice %68 {offsets = [0, 96], sizes = [2, 32], strides = [1, 1]} : vector<2x128xf32> to vector<2x32xf32>
    %73 = arith.mulf %70, %35 : vector<2x32xf32>
    %74 = arith.mulf %69, %71 : vector<2x32xf32>
    %75 = arith.addf %73, %74 : vector<2x32xf32>
    %76 = math.tanh %75 : vector<2x32xf32>
    %77 = arith.mulf %72, %76 : vector<2x32xf32>
    %78 = arith.truncf %77 : vector<2x32xf32> to vector<2x32xbf16>
    %79 = arith.truncf %58 : vector<2x32xf32> to vector<2x32xbf16>
    %80 = tpu.concatenate %78, %79 in 1 : vector<2x32xbf16>, vector<2x32xbf16> -> vector<2x64xbf16>
    %cst_24 = arith.constant dense<0.000000e+00> : vector<2x128xf32>
    %81 = tpu.matmul %80, %13, %cst_24 {dimension_numbers = #tpu.dot_dimension_numbers<[1], [0], [0], [1], [0, 0, 1, 1], [], []>} : vector<2x64xbf16>, vector<64x128xbf16>, vector<2x128xf32> -> vector<2x128xf32>
    %82 = vector.broadcast %14 : vector<1x128xf32> to vector<2x128xf32>
    %83 = arith.addf %81, %82 : vector<2x128xf32>
    %84 = math.tanh %83 : vector<2x128xf32>
    %cst_25 = arith.constant 5.000000e-01 : f32
    %85 = vector.broadcast %cst_25 : f32 to vector<2x128xf32>
    %86 = arith.mulf %85, %84 : vector<2x128xf32>
    %cst_26 = arith.constant 5.000000e-01 : f32
    %87 = vector.broadcast %cst_26 : f32 to vector<2x128xf32>
    %88 = arith.addf %86, %87 : vector<2x128xf32>
    %89 = arith.select %5, %84, %88 : vector<2x128xi1>, vector<2x128xf32>
    %90 = vector.extract_strided_slice %89 {offsets = [0, 0], sizes = [2, 32], strides = [1, 1]} : vector<2x128xf32> to vector<2x32xf32>
    %91 = vector.extract_strided_slice %89 {offsets = [0, 32], sizes = [2, 32], strides = [1, 1]} : vector<2x128xf32> to vector<2x32xf32>
    %92 = vector.extract_strided_slice %89 {offsets = [0, 64], sizes = [2, 32], strides = [1, 1]} : vector<2x128xf32> to vector<2x32xf32>
    %93 = vector.extract_strided_slice %89 {offsets = [0, 96], sizes = [2, 32], strides = [1, 1]} : vector<2x128xf32> to vector<2x32xf32>
    %94 = arith.mulf %91, %56 : vector<2x32xf32>
    %95 = arith.mulf %90, %92 : vector<2x32xf32>
    %96 = arith.addf %94, %95 : vector<2x32xf32>
    %97 = math.tanh %96 : vector<2x32xf32>
    %98 = arith.mulf %93, %97 : vector<2x32xf32>
    %99 = vector.extract_strided_slice %11 {offsets = [4, 0], sizes = [2, 128], strides = [1, 1]} : vector<16x128xf32> to vector<2x128xf32>
    %100 = arith.truncf %77 : vector<2x32xf32> to vector<2x32xbf16>
    %cst_27 = arith.constant dense<0.000000e+00> : vector<2x128xf32>
    %101 = tpu.matmul %100, %12, %cst_27 {dimension_numbers = #tpu.dot_dimension_numbers<[1], [0], [0], [1], [0, 0, 1, 1], [], []>} : vector<2x32xbf16>, vector<32x128xbf16>, vector<2x128xf32> -> vector<2x128xf32>
    %102 = arith.addf %99, %101 : vector<2x128xf32>
    %103 = math.tanh %102 : vector<2x128xf32>
    %cst_28 = arith.constant 5.000000e-01 : f32
    %104 = vector.broadcast %cst_28 : f32 to vector<2x128xf32>
    %105 = arith.mulf %104, %103 : vector<2x128xf32>
    %cst_29 = arith.constant 5.000000e-01 : f32
    %106 = vector.broadcast %cst_29 : f32 to vector<2x128xf32>
    %107 = arith.addf %105, %106 : vector<2x128xf32>
    %108 = arith.select %5, %103, %107 : vector<2x128xi1>, vector<2x128xf32>
    %109 = vector.extract_strided_slice %108 {offsets = [0, 0], sizes = [2, 32], strides = [1, 1]} : vector<2x128xf32> to vector<2x32xf32>
    %110 = vector.extract_strided_slice %108 {offsets = [0, 32], sizes = [2, 32], strides = [1, 1]} : vector<2x128xf32> to vector<2x32xf32>
    %111 = vector.extract_strided_slice %108 {offsets = [0, 64], sizes = [2, 32], strides = [1, 1]} : vector<2x128xf32> to vector<2x32xf32>
    %112 = vector.extract_strided_slice %108 {offsets = [0, 96], sizes = [2, 32], strides = [1, 1]} : vector<2x128xf32> to vector<2x32xf32>
    %113 = arith.mulf %110, %75 : vector<2x32xf32>
    %114 = arith.mulf %109, %111 : vector<2x32xf32>
    %115 = arith.addf %113, %114 : vector<2x32xf32>
    %116 = math.tanh %115 : vector<2x32xf32>
    %117 = arith.mulf %112, %116 : vector<2x32xf32>
    %118 = arith.truncf %117 : vector<2x32xf32> to vector<2x32xbf16>
    %119 = arith.truncf %98 : vector<2x32xf32> to vector<2x32xbf16>
    %120 = tpu.concatenate %118, %119 in 1 : vector<2x32xbf16>, vector<2x32xbf16> -> vector<2x64xbf16>
    %cst_30 = arith.constant dense<0.000000e+00> : vector<2x128xf32>
    %121 = tpu.matmul %120, %13, %cst_30 {dimension_numbers = #tpu.dot_dimension_numbers<[1], [0], [0], [1], [0, 0, 1, 1], [], []>} : vector<2x64xbf16>, vector<64x128xbf16>, vector<2x128xf32> -> vector<2x128xf32>
    %122 = vector.broadcast %14 : vector<1x128xf32> to vector<2x128xf32>
    %123 = arith.addf %121, %122 : vector<2x128xf32>
    %124 = math.tanh %123 : vector<2x128xf32>
    %cst_31 = arith.constant 5.000000e-01 : f32
    %125 = vector.broadcast %cst_31 : f32 to vector<2x128xf32>
    %126 = arith.mulf %125, %124 : vector<2x128xf32>
    %cst_32 = arith.constant 5.000000e-01 : f32
    %127 = vector.broadcast %cst_32 : f32 to vector<2x128xf32>
    %128 = arith.addf %126, %127 : vector<2x128xf32>
    %129 = arith.select %5, %124, %128 : vector<2x128xi1>, vector<2x128xf32>
    %130 = vector.extract_strided_slice %129 {offsets = [0, 0], sizes = [2, 32], strides = [1, 1]} : vector<2x128xf32> to vector<2x32xf32>
    %131 = vector.extract_strided_slice %129 {offsets = [0, 32], sizes = [2, 32], strides = [1, 1]} : vector<2x128xf32> to vector<2x32xf32>
    %132 = vector.extract_strided_slice %129 {offsets = [0, 64], sizes = [2, 32], strides = [1, 1]} : vector<2x128xf32> to vector<2x32xf32>
    %133 = vector.extract_strided_slice %129 {offsets = [0, 96], sizes = [2, 32], strides = [1, 1]} : vector<2x128xf32> to vector<2x32xf32>
    %134 = arith.mulf %131, %96 : vector<2x32xf32>
    %135 = arith.mulf %130, %132 : vector<2x32xf32>
    %136 = arith.addf %134, %135 : vector<2x32xf32>
    %137 = math.tanh %136 : vector<2x32xf32>
    %138 = arith.mulf %133, %137 : vector<2x32xf32>
    %139 = vector.extract_strided_slice %11 {offsets = [6, 0], sizes = [2, 128], strides = [1, 1]} : vector<16x128xf32> to vector<2x128xf32>
    %140 = arith.truncf %117 : vector<2x32xf32> to vector<2x32xbf16>
    %cst_33 = arith.constant dense<0.000000e+00> : vector<2x128xf32>
    %141 = tpu.matmul %140, %12, %cst_33 {dimension_numbers = #tpu.dot_dimension_numbers<[1], [0], [0], [1], [0, 0, 1, 1], [], []>} : vector<2x32xbf16>, vector<32x128xbf16>, vector<2x128xf32> -> vector<2x128xf32>
    %142 = arith.addf %139, %141 : vector<2x128xf32>
    %143 = math.tanh %142 : vector<2x128xf32>
    %cst_34 = arith.constant 5.000000e-01 : f32
    %144 = vector.broadcast %cst_34 : f32 to vector<2x128xf32>
    %145 = arith.mulf %144, %143 : vector<2x128xf32>
    %cst_35 = arith.constant 5.000000e-01 : f32
    %146 = vector.broadcast %cst_35 : f32 to vector<2x128xf32>
    %147 = arith.addf %145, %146 : vector<2x128xf32>
    %148 = arith.select %5, %143, %147 : vector<2x128xi1>, vector<2x128xf32>
    %149 = vector.extract_strided_slice %148 {offsets = [0, 0], sizes = [2, 32], strides = [1, 1]} : vector<2x128xf32> to vector<2x32xf32>
    %150 = vector.extract_strided_slice %148 {offsets = [0, 32], sizes = [2, 32], strides = [1, 1]} : vector<2x128xf32> to vector<2x32xf32>
    %151 = vector.extract_strided_slice %148 {offsets = [0, 64], sizes = [2, 32], strides = [1, 1]} : vector<2x128xf32> to vector<2x32xf32>
    %152 = vector.extract_strided_slice %148 {offsets = [0, 96], sizes = [2, 32], strides = [1, 1]} : vector<2x128xf32> to vector<2x32xf32>
    %153 = arith.mulf %150, %115 : vector<2x32xf32>
    %154 = arith.mulf %149, %151 : vector<2x32xf32>
    %155 = arith.addf %153, %154 : vector<2x32xf32>
    %156 = math.tanh %155 : vector<2x32xf32>
    %157 = arith.mulf %152, %156 : vector<2x32xf32>
    %158 = arith.truncf %157 : vector<2x32xf32> to vector<2x32xbf16>
    %159 = arith.truncf %138 : vector<2x32xf32> to vector<2x32xbf16>
    %160 = tpu.concatenate %158, %159 in 1 : vector<2x32xbf16>, vector<2x32xbf16> -> vector<2x64xbf16>
    %cst_36 = arith.constant dense<0.000000e+00> : vector<2x128xf32>
    %161 = tpu.matmul %160, %13, %cst_36 {dimension_numbers = #tpu.dot_dimension_numbers<[1], [0], [0], [1], [0, 0, 1, 1], [], []>} : vector<2x64xbf16>, vector<64x128xbf16>, vector<2x128xf32> -> vector<2x128xf32>
    %162 = vector.broadcast %14 : vector<1x128xf32> to vector<2x128xf32>
    %163 = arith.addf %161, %162 : vector<2x128xf32>
    %164 = math.tanh %163 : vector<2x128xf32>
    %cst_37 = arith.constant 5.000000e-01 : f32
    %165 = vector.broadcast %cst_37 : f32 to vector<2x128xf32>
    %166 = arith.mulf %165, %164 : vector<2x128xf32>
    %cst_38 = arith.constant 5.000000e-01 : f32
    %167 = vector.broadcast %cst_38 : f32 to vector<2x128xf32>
    %168 = arith.addf %166, %167 : vector<2x128xf32>
    %169 = arith.select %5, %164, %168 : vector<2x128xi1>, vector<2x128xf32>
    %170 = vector.extract_strided_slice %169 {offsets = [0, 0], sizes = [2, 32], strides = [1, 1]} : vector<2x128xf32> to vector<2x32xf32>
    %171 = vector.extract_strided_slice %169 {offsets = [0, 32], sizes = [2, 32], strides = [1, 1]} : vector<2x128xf32> to vector<2x32xf32>
    %172 = vector.extract_strided_slice %169 {offsets = [0, 64], sizes = [2, 32], strides = [1, 1]} : vector<2x128xf32> to vector<2x32xf32>
    %173 = vector.extract_strided_slice %169 {offsets = [0, 96], sizes = [2, 32], strides = [1, 1]} : vector<2x128xf32> to vector<2x32xf32>
    %174 = arith.mulf %171, %136 : vector<2x32xf32>
    %175 = arith.mulf %170, %172 : vector<2x32xf32>
    %176 = arith.addf %174, %175 : vector<2x32xf32>
    %177 = math.tanh %176 : vector<2x32xf32>
    %178 = arith.mulf %173, %177 : vector<2x32xf32>
    %179 = vector.extract_strided_slice %11 {offsets = [8, 0], sizes = [2, 128], strides = [1, 1]} : vector<16x128xf32> to vector<2x128xf32>
    %180 = arith.truncf %157 : vector<2x32xf32> to vector<2x32xbf16>
    %cst_39 = arith.constant dense<0.000000e+00> : vector<2x128xf32>
    %181 = tpu.matmul %180, %12, %cst_39 {dimension_numbers = #tpu.dot_dimension_numbers<[1], [0], [0], [1], [0, 0, 1, 1], [], []>} : vector<2x32xbf16>, vector<32x128xbf16>, vector<2x128xf32> -> vector<2x128xf32>
    %182 = arith.addf %179, %181 : vector<2x128xf32>
    %183 = math.tanh %182 : vector<2x128xf32>
    %cst_40 = arith.constant 5.000000e-01 : f32
    %184 = vector.broadcast %cst_40 : f32 to vector<2x128xf32>
    %185 = arith.mulf %184, %183 : vector<2x128xf32>
    %cst_41 = arith.constant 5.000000e-01 : f32
    %186 = vector.broadcast %cst_41 : f32 to vector<2x128xf32>
    %187 = arith.addf %185, %186 : vector<2x128xf32>
    %188 = arith.select %5, %183, %187 : vector<2x128xi1>, vector<2x128xf32>
    %189 = vector.extract_strided_slice %188 {offsets = [0, 0], sizes = [2, 32], strides = [1, 1]} : vector<2x128xf32> to vector<2x32xf32>
    %190 = vector.extract_strided_slice %188 {offsets = [0, 32], sizes = [2, 32], strides = [1, 1]} : vector<2x128xf32> to vector<2x32xf32>
    %191 = vector.extract_strided_slice %188 {offsets = [0, 64], sizes = [2, 32], strides = [1, 1]} : vector<2x128xf32> to vector<2x32xf32>
    %192 = vector.extract_strided_slice %188 {offsets = [0, 96], sizes = [2, 32], strides = [1, 1]} : vector<2x128xf32> to vector<2x32xf32>
    %193 = arith.mulf %190, %155 : vector<2x32xf32>
    %194 = arith.mulf %189, %191 : vector<2x32xf32>
    %195 = arith.addf %193, %194 : vector<2x32xf32>
    %196 = math.tanh %195 : vector<2x32xf32>
    %197 = arith.mulf %192, %196 : vector<2x32xf32>
    %198 = arith.truncf %197 : vector<2x32xf32> to vector<2x32xbf16>
    %199 = arith.truncf %178 : vector<2x32xf32> to vector<2x32xbf16>
    %200 = tpu.concatenate %198, %199 in 1 : vector<2x32xbf16>, vector<2x32xbf16> -> vector<2x64xbf16>
    %cst_42 = arith.constant dense<0.000000e+00> : vector<2x128xf32>
    %201 = tpu.matmul %200, %13, %cst_42 {dimension_numbers = #tpu.dot_dimension_numbers<[1], [0], [0], [1], [0, 0, 1, 1], [], []>} : vector<2x64xbf16>, vector<64x128xbf16>, vector<2x128xf32> -> vector<2x128xf32>
    %202 = vector.broadcast %14 : vector<1x128xf32> to vector<2x128xf32>
    %203 = arith.addf %201, %202 : vector<2x128xf32>
    %204 = math.tanh %203 : vector<2x128xf32>
    %cst_43 = arith.constant 5.000000e-01 : f32
    %205 = vector.broadcast %cst_43 : f32 to vector<2x128xf32>
    %206 = arith.mulf %205, %204 : vector<2x128xf32>
    %cst_44 = arith.constant 5.000000e-01 : f32
    %207 = vector.broadcast %cst_44 : f32 to vector<2x128xf32>
    %208 = arith.addf %206, %207 : vector<2x128xf32>
    %209 = arith.select %5, %204, %208 : vector<2x128xi1>, vector<2x128xf32>
    %210 = vector.extract_strided_slice %209 {offsets = [0, 0], sizes = [2, 32], strides = [1, 1]} : vector<2x128xf32> to vector<2x32xf32>
    %211 = vector.extract_strided_slice %209 {offsets = [0, 32], sizes = [2, 32], strides = [1, 1]} : vector<2x128xf32> to vector<2x32xf32>
    %212 = vector.extract_strided_slice %209 {offsets = [0, 64], sizes = [2, 32], strides = [1, 1]} : vector<2x128xf32> to vector<2x32xf32>
    %213 = vector.extract_strided_slice %209 {offsets = [0, 96], sizes = [2, 32], strides = [1, 1]} : vector<2x128xf32> to vector<2x32xf32>
    %214 = arith.mulf %211, %176 : vector<2x32xf32>
    %215 = arith.mulf %210, %212 : vector<2x32xf32>
    %216 = arith.addf %214, %215 : vector<2x32xf32>
    %217 = math.tanh %216 : vector<2x32xf32>
    %218 = arith.mulf %213, %217 : vector<2x32xf32>
    %219 = vector.extract_strided_slice %11 {offsets = [10, 0], sizes = [2, 128], strides = [1, 1]} : vector<16x128xf32> to vector<2x128xf32>
    %220 = arith.truncf %197 : vector<2x32xf32> to vector<2x32xbf16>
    %cst_45 = arith.constant dense<0.000000e+00> : vector<2x128xf32>
    %221 = tpu.matmul %220, %12, %cst_45 {dimension_numbers = #tpu.dot_dimension_numbers<[1], [0], [0], [1], [0, 0, 1, 1], [], []>} : vector<2x32xbf16>, vector<32x128xbf16>, vector<2x128xf32> -> vector<2x128xf32>
    %222 = arith.addf %219, %221 : vector<2x128xf32>
    %223 = math.tanh %222 : vector<2x128xf32>
    %cst_46 = arith.constant 5.000000e-01 : f32
    %224 = vector.broadcast %cst_46 : f32 to vector<2x128xf32>
    %225 = arith.mulf %224, %223 : vector<2x128xf32>
    %cst_47 = arith.constant 5.000000e-01 : f32
    %226 = vector.broadcast %cst_47 : f32 to vector<2x128xf32>
    %227 = arith.addf %225, %226 : vector<2x128xf32>
    %228 = arith.select %5, %223, %227 : vector<2x128xi1>, vector<2x128xf32>
    %229 = vector.extract_strided_slice %228 {offsets = [0, 0], sizes = [2, 32], strides = [1, 1]} : vector<2x128xf32> to vector<2x32xf32>
    %230 = vector.extract_strided_slice %228 {offsets = [0, 32], sizes = [2, 32], strides = [1, 1]} : vector<2x128xf32> to vector<2x32xf32>
    %231 = vector.extract_strided_slice %228 {offsets = [0, 64], sizes = [2, 32], strides = [1, 1]} : vector<2x128xf32> to vector<2x32xf32>
    %232 = vector.extract_strided_slice %228 {offsets = [0, 96], sizes = [2, 32], strides = [1, 1]} : vector<2x128xf32> to vector<2x32xf32>
    %233 = arith.mulf %230, %195 : vector<2x32xf32>
    %234 = arith.mulf %229, %231 : vector<2x32xf32>
    %235 = arith.addf %233, %234 : vector<2x32xf32>
    %236 = math.tanh %235 : vector<2x32xf32>
    %237 = arith.mulf %232, %236 : vector<2x32xf32>
    %238 = arith.truncf %237 : vector<2x32xf32> to vector<2x32xbf16>
    %239 = arith.truncf %218 : vector<2x32xf32> to vector<2x32xbf16>
    %240 = tpu.concatenate %238, %239 in 1 : vector<2x32xbf16>, vector<2x32xbf16> -> vector<2x64xbf16>
    %cst_48 = arith.constant dense<0.000000e+00> : vector<2x128xf32>
    %241 = tpu.matmul %240, %13, %cst_48 {dimension_numbers = #tpu.dot_dimension_numbers<[1], [0], [0], [1], [0, 0, 1, 1], [], []>} : vector<2x64xbf16>, vector<64x128xbf16>, vector<2x128xf32> -> vector<2x128xf32>
    %242 = vector.broadcast %14 : vector<1x128xf32> to vector<2x128xf32>
    %243 = arith.addf %241, %242 : vector<2x128xf32>
    %244 = math.tanh %243 : vector<2x128xf32>
    %cst_49 = arith.constant 5.000000e-01 : f32
    %245 = vector.broadcast %cst_49 : f32 to vector<2x128xf32>
    %246 = arith.mulf %245, %244 : vector<2x128xf32>
    %cst_50 = arith.constant 5.000000e-01 : f32
    %247 = vector.broadcast %cst_50 : f32 to vector<2x128xf32>
    %248 = arith.addf %246, %247 : vector<2x128xf32>
    %249 = arith.select %5, %244, %248 : vector<2x128xi1>, vector<2x128xf32>
    %250 = vector.extract_strided_slice %249 {offsets = [0, 0], sizes = [2, 32], strides = [1, 1]} : vector<2x128xf32> to vector<2x32xf32>
    %251 = vector.extract_strided_slice %249 {offsets = [0, 32], sizes = [2, 32], strides = [1, 1]} : vector<2x128xf32> to vector<2x32xf32>
    %252 = vector.extract_strided_slice %249 {offsets = [0, 64], sizes = [2, 32], strides = [1, 1]} : vector<2x128xf32> to vector<2x32xf32>
    %253 = vector.extract_strided_slice %249 {offsets = [0, 96], sizes = [2, 32], strides = [1, 1]} : vector<2x128xf32> to vector<2x32xf32>
    %254 = arith.mulf %251, %216 : vector<2x32xf32>
    %255 = arith.mulf %250, %252 : vector<2x32xf32>
    %256 = arith.addf %254, %255 : vector<2x32xf32>
    %257 = math.tanh %256 : vector<2x32xf32>
    %258 = arith.mulf %253, %257 : vector<2x32xf32>
    %259 = vector.extract_strided_slice %11 {offsets = [12, 0], sizes = [2, 128], strides = [1, 1]} : vector<16x128xf32> to vector<2x128xf32>
    %260 = arith.truncf %237 : vector<2x32xf32> to vector<2x32xbf16>
    %cst_51 = arith.constant dense<0.000000e+00> : vector<2x128xf32>
    %261 = tpu.matmul %260, %12, %cst_51 {dimension_numbers = #tpu.dot_dimension_numbers<[1], [0], [0], [1], [0, 0, 1, 1], [], []>} : vector<2x32xbf16>, vector<32x128xbf16>, vector<2x128xf32> -> vector<2x128xf32>
    %262 = arith.addf %259, %261 : vector<2x128xf32>
    %263 = math.tanh %262 : vector<2x128xf32>
    %cst_52 = arith.constant 5.000000e-01 : f32
    %264 = vector.broadcast %cst_52 : f32 to vector<2x128xf32>
    %265 = arith.mulf %264, %263 : vector<2x128xf32>
    %cst_53 = arith.constant 5.000000e-01 : f32
    %266 = vector.broadcast %cst_53 : f32 to vector<2x128xf32>
    %267 = arith.addf %265, %266 : vector<2x128xf32>
    %268 = arith.select %5, %263, %267 : vector<2x128xi1>, vector<2x128xf32>
    %269 = vector.extract_strided_slice %268 {offsets = [0, 0], sizes = [2, 32], strides = [1, 1]} : vector<2x128xf32> to vector<2x32xf32>
    %270 = vector.extract_strided_slice %268 {offsets = [0, 32], sizes = [2, 32], strides = [1, 1]} : vector<2x128xf32> to vector<2x32xf32>
    %271 = vector.extract_strided_slice %268 {offsets = [0, 64], sizes = [2, 32], strides = [1, 1]} : vector<2x128xf32> to vector<2x32xf32>
    %272 = vector.extract_strided_slice %268 {offsets = [0, 96], sizes = [2, 32], strides = [1, 1]} : vector<2x128xf32> to vector<2x32xf32>
    %273 = arith.mulf %270, %235 : vector<2x32xf32>
    %274 = arith.mulf %269, %271 : vector<2x32xf32>
    %275 = arith.addf %273, %274 : vector<2x32xf32>
    %276 = math.tanh %275 : vector<2x32xf32>
    %277 = arith.mulf %272, %276 : vector<2x32xf32>
    %278 = arith.truncf %277 : vector<2x32xf32> to vector<2x32xbf16>
    %279 = arith.truncf %258 : vector<2x32xf32> to vector<2x32xbf16>
    %280 = tpu.concatenate %278, %279 in 1 : vector<2x32xbf16>, vector<2x32xbf16> -> vector<2x64xbf16>
    %cst_54 = arith.constant dense<0.000000e+00> : vector<2x128xf32>
    %281 = tpu.matmul %280, %13, %cst_54 {dimension_numbers = #tpu.dot_dimension_numbers<[1], [0], [0], [1], [0, 0, 1, 1], [], []>} : vector<2x64xbf16>, vector<64x128xbf16>, vector<2x128xf32> -> vector<2x128xf32>
    %282 = vector.broadcast %14 : vector<1x128xf32> to vector<2x128xf32>
    %283 = arith.addf %281, %282 : vector<2x128xf32>
    %284 = math.tanh %283 : vector<2x128xf32>
    %cst_55 = arith.constant 5.000000e-01 : f32
    %285 = vector.broadcast %cst_55 : f32 to vector<2x128xf32>
    %286 = arith.mulf %285, %284 : vector<2x128xf32>
    %cst_56 = arith.constant 5.000000e-01 : f32
    %287 = vector.broadcast %cst_56 : f32 to vector<2x128xf32>
    %288 = arith.addf %286, %287 : vector<2x128xf32>
    %289 = arith.select %5, %284, %288 : vector<2x128xi1>, vector<2x128xf32>
    %290 = vector.extract_strided_slice %289 {offsets = [0, 0], sizes = [2, 32], strides = [1, 1]} : vector<2x128xf32> to vector<2x32xf32>
    %291 = vector.extract_strided_slice %289 {offsets = [0, 32], sizes = [2, 32], strides = [1, 1]} : vector<2x128xf32> to vector<2x32xf32>
    %292 = vector.extract_strided_slice %289 {offsets = [0, 64], sizes = [2, 32], strides = [1, 1]} : vector<2x128xf32> to vector<2x32xf32>
    %293 = vector.extract_strided_slice %289 {offsets = [0, 96], sizes = [2, 32], strides = [1, 1]} : vector<2x128xf32> to vector<2x32xf32>
    %294 = arith.mulf %291, %256 : vector<2x32xf32>
    %295 = arith.mulf %290, %292 : vector<2x32xf32>
    %296 = arith.addf %294, %295 : vector<2x32xf32>
    %297 = math.tanh %296 : vector<2x32xf32>
    %298 = arith.mulf %293, %297 : vector<2x32xf32>
    %299 = vector.extract_strided_slice %11 {offsets = [14, 0], sizes = [2, 128], strides = [1, 1]} : vector<16x128xf32> to vector<2x128xf32>
    %300 = arith.truncf %277 : vector<2x32xf32> to vector<2x32xbf16>
    %cst_57 = arith.constant dense<0.000000e+00> : vector<2x128xf32>
    %301 = tpu.matmul %300, %12, %cst_57 {dimension_numbers = #tpu.dot_dimension_numbers<[1], [0], [0], [1], [0, 0, 1, 1], [], []>} : vector<2x32xbf16>, vector<32x128xbf16>, vector<2x128xf32> -> vector<2x128xf32>
    %302 = arith.addf %299, %301 : vector<2x128xf32>
    %303 = math.tanh %302 : vector<2x128xf32>
    %cst_58 = arith.constant 5.000000e-01 : f32
    %304 = vector.broadcast %cst_58 : f32 to vector<2x128xf32>
    %305 = arith.mulf %304, %303 : vector<2x128xf32>
    %cst_59 = arith.constant 5.000000e-01 : f32
    %306 = vector.broadcast %cst_59 : f32 to vector<2x128xf32>
    %307 = arith.addf %305, %306 : vector<2x128xf32>
    %308 = arith.select %5, %303, %307 : vector<2x128xi1>, vector<2x128xf32>
    %309 = vector.extract_strided_slice %308 {offsets = [0, 0], sizes = [2, 32], strides = [1, 1]} : vector<2x128xf32> to vector<2x32xf32>
    %310 = vector.extract_strided_slice %308 {offsets = [0, 32], sizes = [2, 32], strides = [1, 1]} : vector<2x128xf32> to vector<2x32xf32>
    %311 = vector.extract_strided_slice %308 {offsets = [0, 64], sizes = [2, 32], strides = [1, 1]} : vector<2x128xf32> to vector<2x32xf32>
    %312 = vector.extract_strided_slice %308 {offsets = [0, 96], sizes = [2, 32], strides = [1, 1]} : vector<2x128xf32> to vector<2x32xf32>
    %313 = arith.mulf %310, %275 : vector<2x32xf32>
    %314 = arith.mulf %309, %311 : vector<2x32xf32>
    %315 = arith.addf %313, %314 : vector<2x32xf32>
    %316 = math.tanh %315 : vector<2x32xf32>
    %317 = arith.mulf %312, %316 : vector<2x32xf32>
    %318 = arith.truncf %317 : vector<2x32xf32> to vector<2x32xbf16>
    %319 = arith.truncf %298 : vector<2x32xf32> to vector<2x32xbf16>
    %320 = tpu.concatenate %318, %319 in 1 : vector<2x32xbf16>, vector<2x32xbf16> -> vector<2x64xbf16>
    %cst_60 = arith.constant dense<0.000000e+00> : vector<2x128xf32>
    %321 = tpu.matmul %320, %13, %cst_60 {dimension_numbers = #tpu.dot_dimension_numbers<[1], [0], [0], [1], [0, 0, 1, 1], [], []>} : vector<2x64xbf16>, vector<64x128xbf16>, vector<2x128xf32> -> vector<2x128xf32>
    %322 = vector.broadcast %14 : vector<1x128xf32> to vector<2x128xf32>
    %323 = arith.addf %321, %322 : vector<2x128xf32>
    %324 = math.tanh %323 : vector<2x128xf32>
    %cst_61 = arith.constant 5.000000e-01 : f32
    %325 = vector.broadcast %cst_61 : f32 to vector<2x128xf32>
    %326 = arith.mulf %325, %324 : vector<2x128xf32>
    %cst_62 = arith.constant 5.000000e-01 : f32
    %327 = vector.broadcast %cst_62 : f32 to vector<2x128xf32>
    %328 = arith.addf %326, %327 : vector<2x128xf32>
    %329 = arith.select %5, %324, %328 : vector<2x128xi1>, vector<2x128xf32>
    %330 = vector.extract_strided_slice %329 {offsets = [0, 0], sizes = [2, 32], strides = [1, 1]} : vector<2x128xf32> to vector<2x32xf32>
    %331 = vector.extract_strided_slice %329 {offsets = [0, 32], sizes = [2, 32], strides = [1, 1]} : vector<2x128xf32> to vector<2x32xf32>
    %332 = vector.extract_strided_slice %329 {offsets = [0, 64], sizes = [2, 32], strides = [1, 1]} : vector<2x128xf32> to vector<2x32xf32>
    %333 = vector.extract_strided_slice %329 {offsets = [0, 96], sizes = [2, 32], strides = [1, 1]} : vector<2x128xf32> to vector<2x32xf32>
    %334 = arith.mulf %331, %296 : vector<2x32xf32>
    %335 = arith.mulf %330, %332 : vector<2x32xf32>
    %336 = arith.addf %334, %335 : vector<2x32xf32>
    %337 = math.tanh %336 : vector<2x32xf32>
    %338 = arith.mulf %333, %337 : vector<2x32xf32>
    %339 = arith.truncf %338 : vector<2x32xf32> to vector<2x32xbf16>
    %c0_63 = arith.constant 0 : index
    %c0_64 = arith.constant 0 : index
    %340 = vector.load %arg6[%c0_63, %c0_64] : memref<32x4xbf16, #tpu.memory_space<vmem>>, vector<32x4xbf16>
    %cst_65 = arith.constant dense<0.000000e+00> : vector<2x4xf32>
    %341 = tpu.matmul %339, %340, %cst_65 {dimension_numbers = #tpu.dot_dimension_numbers<[1], [0], [0], [1], [0, 0, 1, 1], [], []>} : vector<2x32xbf16>, vector<32x4xbf16>, vector<2x4xf32> -> vector<2x4xf32>
    %c0_66 = arith.constant 0 : index
    %c0_67 = arith.constant 0 : index
    %342 = vector.load %arg7[%c0_66, %c0_67] : memref<1x4xf32, #tpu.memory_space<vmem>>, vector<1x4xf32>
    %343 = vector.broadcast %342 : vector<1x4xf32> to vector<2x4xf32>
    %344 = arith.addf %341, %343 : vector<2x4xf32>
    %c0_68 = arith.constant 0 : index
    %c0_69 = arith.constant 0 : index
    %345 = vector.load %arg8[%c0_68, %c0_69] : memref<2x4xf32, #tpu.memory_space<vmem>>, vector<2x4xf32>
    tpu.vector_store %arg8[%c0_68, %c0_69], %344 {strides = array<i32>} : memref<2x4xf32, #tpu.memory_space<vmem>>, vector<2x4xf32>,
    return
  }
}

</mosaic_0001>

<llo_original>
// kernel: tpu_custom_call.1
$region0: #{tpu_custom_call.1}
  #allocation0 [shape = 'u32[]', space=smem, size = 0x4, offset = 0x4, fixed_abs, tag = 'smem constant byte address 0x4 - core index']
  #allocation1 [shape = 'u32[144,128]{1,0:T(1,128)}', space=vmem, size = 0x12000, scoped, tag = 'internal scratch']
  %s0 = inlined_call_operand.hbm [shape: bf16[16,16], index: 0, kind: input, shape index: {}]
  %s1 = inlined_call_operand.hbm [shape: bf16[16,128], index: 1, kind: input, shape index: {}]
  %s2 = inlined_call_operand.hbm [shape: bf16[32,128], index: 2, kind: input, shape index: {}]
  %s3 = inlined_call_operand.vmem [shape: f32[1,128], index: 3, kind: input, shape index: {}]
  %s4 = inlined_call_operand.vmem [shape: bf16[64,128], index: 4, kind: input, shape index: {}]
  %s5 = inlined_call_operand.vmem [shape: f32[1,128], index: 5, kind: input, shape index: {}]
  %s6 = inlined_call_operand.vmem [shape: bf16[32,4], index: 6, kind: input, shape index: {}]
  %s7 = inlined_call_operand.vmem [shape: f32[1,4], index: 7, kind: input, shape index: {}]
  %s8 = inlined_call_operand.hbm [shape: f32[2,4], index: 8, kind: output, shape index: {}]
  %s9 = sld [smem:[#allocation0]]
  $region54: #{tpu_custom_call.1} parent=0
    _
  %s11 = ssub.s32 1, %s9
  %s12 = scalar_select 0, %s11, %s9
  $region1: #{tpu_custom_call.1} parent=0
    #allocation2 [shape = 'u8[4096]{0}', space=vmem, size = 0x1000, scoped, tag = 'input window, operand 0, single buffered']
    #allocation3 [shape = 's32[1]{0}', space=sflag, size = 0x4, scoped, tag = 'scoped memory for tpu_custom_call.1']
    #allocation4 [shape = 's32[1]{0}', space=sflag, size = 0x4, scoped, tag = 'scoped memory for tpu_custom_call.1']
    #allocation5 [shape = 'u8[4096]{0}', space=vmem, size = 0x1000, scoped, tag = 'input window, operand 1, single buffered']
    #allocation6 [shape = 's32[1]{0}', space=sflag, size = 0x4, scoped, tag = 'scoped memory for tpu_custom_call.1']
    #allocation7 [shape = 'u8[8192]{0}', space=vmem, size = 0x2000, scoped, tag = 'input window, operand 2, single buffered']
    #allocation8 [shape = 'u8[1024]{0}', space=vmem, size = 0x400, scoped, tag = 'output window, operand 0, single buffered']
    %13 = vsyncpa [#allocation3], 0
    %14 = vsyncpa [#allocation6], 0
    %15 = vsyncpa [#allocation4], 0
    // Predicated region
    $region2: #{tpu_custom_call.1} parent=1 // pred_check
      _
    $region3: #{tpu_custom_call.1} parent=1 // pred_check_branch
      %17 = sbr.rel (0) target = $region5
    $region4: #{tpu_custom_call.1} parent=1 // pred_region
      %s19 = ssub.s32 128, 128
      %20 = vsyncadd [#allocation3], %s19
      %s21 = sshll.u32 [#allocation2], 4
      %s22 = int_to_ptr.vmem [resolvable:$true] %s21
      %27 = dma.hbm_to_vmem [thread:$0]  %s0, 128, %s22, [#allocation3], 64, 64, 4
    $region5: #{tpu_custom_call.1} parent=1 // pred_fallthru
      _
    // Predicated region
    $region6: #{tpu_custom_call.1} parent=1 // pred_check
      _
    $region7: #{tpu_custom_call.1} parent=1 // pred_check_branch
      %29 = sbr.rel (0) target = $region9
    $region8: #{tpu_custom_call.1} parent=1 // pred_region
      %s31 = ssub.s32 128, 128
      %32 = vsyncadd [#allocation6], %s31
      %s33 = sshll.u32 [#allocation5], 4
      %s34 = int_to_ptr.vmem [resolvable:$true] %s33
      %39 = dma.hbm_to_vmem [thread:$0]  %s1, 128, %s34, [#allocation6], 64, 64, 4
    $region9: #{tpu_custom_call.1} parent=1 // pred_fallthru
      _
    // Predicated region
    $region10: #{tpu_custom_call.1} parent=1 // pred_check
      _
    $region11: #{tpu_custom_call.1} parent=1 // pred_check_branch
      %41 = sbr.rel (0) target = $region13
    $region12: #{tpu_custom_call.1} parent=1 // pred_region
      %s43 = ssub.s32 256, 256
      %44 = vsyncadd [#allocation6], %s43
      %s45 = sshll.u32 [#allocation7], 4
      %s46 = int_to_ptr.vmem [resolvable:$true] %s45
      %51 = dma.hbm_to_vmem [thread:$0]  %s2, 256, %s46, [#allocation6], 64, 64, 4
    $region13: #{tpu_custom_call.1} parent=1 // pred_fallthru
      _
    // Predicated region
    $region14: #{tpu_custom_call.1} parent=1 // pred_check
      _
    $region15: #{tpu_custom_call.1} parent=1 // pred_check_branch
      %53 = sbr.rel (0) target = $region17
    $region16: #{tpu_custom_call.1} parent=1 // pred_region
      _
    $region17: #{tpu_custom_call.1} parent=1 // pred_fallthru
      _
    // Predicated region
    $region18: #{tpu_custom_call.1} parent=1 // pred_check
      _
    $region19: #{tpu_custom_call.1} parent=1 // pred_check_branch
      %55 = sbr.rel (0) target = $region21
    $region20: #{tpu_custom_call.1} parent=1 // pred_region
      _
    $region21: #{tpu_custom_call.1} parent=1 // pred_fallthru
      _
    // Predicated region
    $region22: #{tpu_custom_call.1} parent=1 // pred_check
      _
    $region23: #{tpu_custom_call.1} parent=1 // pred_check_branch
      %57 = sbr.rel (0) target = $region25
    $region24: #{tpu_custom_call.1} parent=1 // pred_region
      _
    $region25: #{tpu_custom_call.1} parent=1 // pred_fallthru
      _
    // Predicated region
    $region26: #{tpu_custom_call.1} parent=1 // pred_check
      _
    $region27: #{tpu_custom_call.1} parent=1 // pred_check_branch
      %59 = sbr.rel (0) target = $region29
    $region28: #{tpu_custom_call.1} parent=1 // pred_region
      _
    $region29: #{tpu_custom_call.1} parent=1 // pred_fallthru
      _
    // Predicated region
    $region30: #{tpu_custom_call.1} parent=1 // pred_check
      _
    $region31: #{tpu_custom_call.1} parent=1 // pred_check_branch
      %61 = sbr.rel (0) target = $region33
    $region32: #{tpu_custom_call.1} parent=1 // pred_region
      _
    $region33: #{tpu_custom_call.1} parent=1 // pred_fallthru
      _
    // Predicated region
    $region34: #{tpu_custom_call.1} parent=1 // pred_check
      _
    $region35: #{tpu_custom_call.1} parent=1 // pred_check_branch
      %63 = sbr.rel (0) target = $region37
    $region36: #{tpu_custom_call.1} parent=1 // pred_region
      %64 = dma.done [#allocation3], 128
    $region37: #{tpu_custom_call.1} parent=1 // pred_fallthru
      _
    // Predicated region
    $region38: #{tpu_custom_call.1} parent=1 // pred_check
      _
    $region39: #{tpu_custom_call.1} parent=1 // pred_check_branch
      %66 = sbr.rel (0) target = $region41
    $region40: #{tpu_custom_call.1} parent=1 // pred_region
      %67 = dma.done [#allocation6], 128
    $region41: #{tpu_custom_call.1} parent=1 // pred_fallthru
      _
    // Predicated region
    $region42: #{tpu_custom_call.1} parent=1 // pred_check
      _
    $region43: #{tpu_custom_call.1} parent=1 // pred_check_branch
      %69 = sbr.rel (0) target = $region45
    $region44: #{tpu_custom_call.1} parent=1 // pred_region
      %70 = dma.done [#allocation6], 256
    $region45: #{tpu_custom_call.1} parent=1 // pred_fallthru
      _
    %v72 = vlaneseq
    %v73 = vand.u32 %v72, 127
    %vm74 = vcmp.ge.s32.totalorder %v73, 64
    %vm75 = vcmp.lt.s32.totalorder %v73, 96
    %vm76 = vmand %vm74, %vm75
    %v77 = vld [vmem:[#allocation2] sm:$0xf]
    %v78 = vld [vmem:[#allocation2 + $0x4] sm:$0xf]
    %v79 = vld [vmem:[#allocation5] sm:$0xf]
    %v80 = vld [vmem:[#allocation5 + $0x4] sm:$0xf]
    %v81 = vld [vmem:[%s3] sm:$0x1]
    %v83 = vlaneseq
    %v84 = vshrl.u32 %v83, 7
    %v85 = vsub.s32 0, %v84
    %v86 = vrot.slane %v81, %v85
    %v90 = vunpack.c.l.b16 %v77
    %v91 = vunpack.c.l.b16 %v78
    %v92 = vpack.c.b16 %v91, %v90
    %v95 = vunpack.c.l.b16 %v79
    %v96 = vunpack.c.l.b16 %v80
    %v97 = vpack.c.b16 %v96, %v95
    %vm99 = vcmask 130048
    %v101 = vsel %vm99, %v92, 0
    %103 = vmatprep.subr.bf16.mxu0 0
    %104 = vmatpush1.bf16.msra.mxu0 %v97
    %105 = vmatprep.subr.bf16.mxu0 0
    %106 = vmatpush1.bf16.msra.mxu0 0
    %107 = vmatprep.subr.bf16.mxu0 0
    %108 = vmatpush1.bf16.msra.mxu0 0
    %109 = vmatprep.subr.bf16.mxu0 0
    %110 = vmatpush1.bf16.msra.mxu0 0
    %111 = vmatprep.subr.bf16.mxu0 0
    %112 = vmatpush1.bf16.msra.mxu0 0
    %113 = vmatprep.subr.bf16.mxu0 0
    %114 = vmatpush1.bf16.msra.mxu0 0
    %115 = vmatprep.subr.bf16.mxu0 0
    %116 = vmatpush1.bf16.msra.mxu0 0
    %117 = vmatprep.subr.bf16.mxu0 0
    %118 = vmatpush1.bf16.msra.mxu0 0
    %119 = vmatprep.subr.bf16.mxu0 0
    %120 = vmatpush1.bf16.msra.mxu0 0
    %121 = vmatprep.subr.bf16.mxu0 0
    %122 = vmatpush1.bf16.msra.mxu0 0
    %123 = vmatprep.subr.bf16.mxu0 0
    %124 = vmatpush1.bf16.msra.mxu0 0
    %125 = vmatprep.subr.bf16.mxu0 0
    %126 = vmatpush1.bf16.msra.mxu0 0
    %127 = vmatprep.subr.bf16.mxu0 0
    %128 = vmatpush1.bf16.msra.mxu0 0
    %129 = vmatprep.subr.bf16.mxu0 0
    %130 = vmatpush1.bf16.msra.mxu0 0
    %131 = vmatprep.subr.bf16.mxu0 0
    %132 = vmatpush1.bf16.msra.mxu0 0
    %133 = vmatprep.subr.bf16.mxu0 0
    %134 = vmatpush1.bf16.msra.mxu0 0
    %135 = vmatprep.mubr.bf16.mxu0 0
    %136 = vmatmul.mubr.bf16.gmra.mrb[0].mxu0 %v101
    %v137 = vpop.f32.mrb[0].mxu0
    %v138 = vadd.f32 %v86, %v137
    %v139 = vpop.f32.mrb[0].mxu0
    %v140 = vpop.f32.mrb[0].mxu0
    %v141 = vadd.f32 %v86, %v140
    %v142 = vpop.f32.mrb[0].mxu0
    %143 = vdwg.mxu0
    %v144 = vld [vmem:[#allocation7] sm:$0xf]
    %v145 = vld [vmem:[#allocation7 + $0x4] sm:$0xf]
    %v146 = vld [vmem:[#allocation7 + $0x8] sm:$0xf]
    %v147 = vld [vmem:[#allocation7 + $0xc] sm:$0xf]
    %v148 = vld [vmem:[%s4] sm:$0xf]
    %v149 = vld [vmem:[%s4 + $0x4] sm:$0xf]
    %v150 = vld [vmem:[%s4 + $0x8] sm:$0xf]
    %v151 = vld [vmem:[%s4 + $0xc] sm:$0xf]
    %v152 = vld [vmem:[%s4 + $0x10] sm:$0xf]
    %v153 = vld [vmem:[%s4 + $0x14] sm:$0xf]
    %v154 = vld [vmem:[%s4 + $0x18] sm:$0xf]
    %v155 = vld [vmem:[%s4 + $0x1c] sm:$0xf]
    %v156 = vld [vmem:[%s5] sm:$0x1]
    %v161 = vunpack.c.l.b16 %v144
    %v162 = vunpack.c.l.b16 %v145
    %v163 = vunpack.c.l.b16 %v146
    %v164 = vunpack.c.l.b16 %v147
    %v165 = vpack.c.b16 %v162, %v161
    %v166 = vpack.c.b16 %v164, %v163
    %vm169 = vcmask 261120
    %v171 = vsel %vm169, 0, 0
    %173 = vmatprep.subr.bf16.mxu0 0
    %174 = vmatpush1.bf16.msra.mxu0 %v165
    %175 = vmatprep.subr.bf16.mxu0 0
    %176 = vmatpush1.bf16.msra.mxu0 %v166
    %177 = vmatprep.subr.bf16.mxu0 0
    %178 = vmatpush1.bf16.msra.mxu0 0
    %179 = vmatprep.subr.bf16.mxu0 0
    %180 = vmatpush1.bf16.msra.mxu0 0
    %181 = vmatprep.subr.bf16.mxu0 0
    %182 = vmatpush1.bf16.msra.mxu0 0
    %183 = vmatprep.subr.bf16.mxu0 0
    %184 = vmatpush1.bf16.msra.mxu0 0
    %185 = vmatprep.subr.bf16.mxu0 0
    %186 = vmatpush1.bf16.msra.mxu0 0
    %187 = vmatprep.subr.bf16.mxu0 0
    %188 = vmatpush1.bf16.msra.mxu0 0
    %189 = vmatprep.subr.bf16.mxu0 0
    %190 = vmatpush1.bf16.msra.mxu0 0
    %191 = vmatprep.subr.bf16.mxu0 0
    %192 = vmatpush1.bf16.msra.mxu0 0
    %193 = vmatprep.subr.bf16.mxu0 0
    %194 = vmatpush1.bf16.msra.mxu0 0
    %195 = vmatprep.subr.bf16.mxu0 0
    %196 = vmatpush1.bf16.msra.mxu0 0
    %197 = vmatprep.subr.bf16.mxu0 0
    %198 = vmatpush1.bf16.msra.mxu0 0
    %199 = vmatprep.subr.bf16.mxu0 0
    %200 = vmatpush1.bf16.msra.mxu0 0
    %201 = vmatprep.subr.bf16.mxu0 0
    %202 = vmatpush1.bf16.msra.mxu0 0
    %203 = vmatprep.subr.bf16.mxu0 0
    %204 = vmatpush1.bf16.msra.mxu0 0
    %205 = vmatprep.mubr.bf16.mxu0 0
    %206 = vmatmul.mubr.bf16.gmra.mrb[0].mxu0 %v171
    %v207 = vpop.f32.mrb[0].mxu0
    %v208 = vadd.f32 0.0, %v207
    %v209 = vpop.f32.mrb[0].mxu0
    %v210 = vpop.f32.mrb[0].mxu0
    %v211 = vpop.f32.mrb[0].mxu0
    %212 = vdwg.mxu0
    %v213 = vadd.f32 %v138, %v208
    %v214 = vtanh.pop %v213
    %v215 = vmul.f32 %v214, 0.5
    %v216 = vadd.f32 %v215, 0.5
    %v217 = vsel %vm76, %v214, %v216
    %v218 = vmul.f32 %v217, 0.0
    %220 = vrot.lane.b32.xlu0 %v217, 64
    %v221 = vpop.permute.xlu0 %220
    %v223 = vmul.f32 %v217, %v221
    %225 = vrot.lane.b32.xlu0 %v223, 32
    %v226 = vpop.permute.xlu0 %225
    %v228 = vadd.f32 %v218, %v226
    %v229 = vtanh.pop %v228
    %231 = vrot.lane.b32.xlu0 %v229, 64
    %v232 = vpop.permute.xlu0 %231
    %v234 = vmul.f32 %v217, %v232
    %v235 = vpack.c.bf16 %v234, %v234
    %237 = vrot.lane.b32.xlu0 %v235, 32
    %v238 = vpop.permute.xlu0 %237
    %v240 = vsel %vm169, %v238, 0
    %v242 = vlaneseq
    %v243 = vshrl.u32 %v242, 7
    %v244 = vsub.s32 0, %v243
    %v245 = vrot.slane %v156, %v244
    %v255 = vunpack.c.l.b16 %v148
    %v256 = vunpack.c.l.b16 %v149
    %v257 = vunpack.c.l.b16 %v150
    %v258 = vunpack.c.l.b16 %v151
    %v259 = vunpack.c.l.b16 %v152
    %v260 = vunpack.c.l.b16 %v153
    %v261 = vunpack.c.l.b16 %v154
    %v262 = vunpack.c.l.b16 %v155
    %v263 = vpack.c.b16 %v256, %v255
    %v264 = vpack.c.b16 %v258, %v257
    %v265 = vpack.c.b16 %v260, %v259
    %v266 = vpack.c.b16 %v262, %v261
    %vm271 = vcmask 523264
    %v272 = vsel %vm271, %v240, 0
    %274 = vmatprep.subr.bf16.mxu0 0
    %275 = vmatpush1.bf16.msra.mxu0 %v263
    %276 = vmatprep.subr.bf16.mxu0 0
    %277 = vmatpush1.bf16.msra.mxu0 %v264
    %278 = vmatprep.subr.bf16.mxu0 0
    %279 = vmatpush1.bf16.msra.mxu0 %v265
    %280 = vmatprep.subr.bf16.mxu0 0
    %281 = vmatpush1.bf16.msra.mxu0 %v266
    %282 = vmatprep.subr.bf16.mxu0 0
    %283 = vmatpush1.bf16.msra.mxu0 0
    %284 = vmatprep.subr.bf16.mxu0 0
    %285 = vmatpush1.bf16.msra.mxu0 0
    %286 = vmatprep.subr.bf16.mxu0 0
    %287 = vmatpush1.bf16.msra.mxu0 0
    %288 = vmatprep.subr.bf16.mxu0 0
    %289 = vmatpush1.bf16.msra.mxu0 0
    %290 = vmatprep.subr.bf16.mxu0 0
    %291 = vmatpush1.bf16.msra.mxu0 0
    %292 = vmatprep.subr.bf16.mxu0 0
    %293 = vmatpush1.bf16.msra.mxu0 0
    %294 = vmatprep.subr.bf16.mxu0 0
    %295 = vmatpush1.bf16.msra.mxu0 0
    %296 = vmatprep.subr.bf16.mxu0 0
    %297 = vmatpush1.bf16.msra.mxu0 0
    %298 = vmatprep.subr.bf16.mxu0 0
    %299 = vmatpush1.bf16.msra.mxu0 0
    %300 = vmatprep.subr.bf16.mxu0 0
    %301 = vmatpush1.bf16.msra.mxu0 0
    %302 = vmatprep.subr.bf16.mxu0 0
    %303 = vmatpush1.bf16.msra.mxu0 0
    %304 = vmatprep.subr.bf16.mxu0 0
    %305 = vmatpush1.bf16.msra.mxu0 0
    %306 = vmatprep.mubr.bf16.mxu0 0
    %307 = vmatmul.mubr.bf16.gmra.mrb[0].mxu0 %v272
    %v308 = vpop.f32.mrb[0].mxu0
    %v309 = vadd.f32 %v245, %v308
    %v310 = vpop.f32.mrb[0].mxu0
    %v311 = vpop.f32.mrb[0].mxu0
    %v312 = vpop.f32.mrb[0].mxu0
    %313 = vdwg.mxu0
    %v314 = vtanh.pop %v309
    %v315 = vmul.f32 %v314, 0.5
    %v316 = vadd.f32 %v315, 0.5
    %v317 = vsel %vm76, %v314, %v316
    %v318 = vmul.f32 %v317, 0.0
    %320 = vrot.lane.b32.xlu0 %v317, 64
    %v321 = vpop.permute.xlu0 %320
    %v323 = vmul.f32 %v317, %v321
    %325 = vrot.lane.b32.xlu0 %v323, 32
    %v326 = vpop.permute.xlu0 %325
    %v328 = vadd.f32 %v318, %v326
    %v329 = vtanh.pop %v328
    %331 = vrot.lane.b32.xlu0 %v329, 64
    %v332 = vpop.permute.xlu0 %331
    %v334 = vmul.f32 %v317, %v332
    %v335 = vsel %vm169, %v238, 0
    %337 = vmatprep.subr.bf16.mxu0 0
    %338 = vmatpush1.bf16.msra.mxu0 %v165
    %339 = vmatprep.subr.bf16.mxu0 0
    %340 = vmatpush1.bf16.msra.mxu0 %v166
    %341 = vmatprep.subr.bf16.mxu0 0
    %342 = vmatpush1.bf16.msra.mxu0 0
    %343 = vmatprep.subr.bf16.mxu0 0
    %344 = vmatpush1.bf16.msra.mxu0 0
    %345 = vmatprep.subr.bf16.mxu0 0
    %346 = vmatpush1.bf16.msra.mxu0 0
    %347 = vmatprep.subr.bf16.mxu0 0
    %348 = vmatpush1.bf16.msra.mxu0 0
    %349 = vmatprep.subr.bf16.mxu0 0
    %350 = vmatpush1.bf16.msra.mxu0 0
    %351 = vmatprep.subr.bf16.mxu0 0
    %352 = vmatpush1.bf16.msra.mxu0 0
    %353 = vmatprep.subr.bf16.mxu0 0
    %354 = vmatpush1.bf16.msra.mxu0 0
    %355 = vmatprep.subr.bf16.mxu0 0
    %356 = vmatpush1.bf16.msra.mxu0 0
    %357 = vmatprep.subr.bf16.mxu0 0
    %358 = vmatpush1.bf16.msra.mxu0 0
    %359 = vmatprep.subr.bf16.mxu0 0
    %360 = vmatpush1.bf16.msra.mxu0 0
    %361 = vmatprep.subr.bf16.mxu0 0
    %362 = vmatpush1.bf16.msra.mxu0 0
    %363 = vmatprep.subr.bf16.mxu0 0
    %364 = vmatpush1.bf16.msra.mxu0 0
    %365 = vmatprep.subr.bf16.mxu0 0
    %366 = vmatpush1.bf16.msra.mxu0 0
    %367 = vmatprep.subr.bf16.mxu0 0
    %368 = vmatpush1.bf16.msra.mxu0 0
    %369 = vmatprep.mubr.bf16.mxu0 0
    %370 = vmatmul.mubr.bf16.gmra.mrb[0].mxu0 %v335
    %v371 = vpop.f32.mrb[0].mxu0
    %v372 = vadd.f32 0.0, %v371
    %v373 = vpop.f32.mrb[0].mxu0
    %v374 = vpop.f32.mrb[0].mxu0
    %v375 = vpop.f32.mrb[0].mxu0
    %376 = vdwg.mxu0
    %v378 = vrot.slane %v372, 6
    %v380 = vadd.f32 %v138, %v378
    %v381 = vtanh.pop %v380
    %v382 = vmul.f32 %v381, 0.5
    %v383 = vadd.f32 %v382, 0.5
    %v384 = vsel %vm76, %v381, %v383
    %v386 = vrot.slane %v228, 6
    %v388 = vmul.f32 %v384, %v386
    %390 = vrot.lane.b32.xlu0 %v384, 64
    %v391 = vpop.permute.xlu0 %390
    %v393 = vmul.f32 %v384, %v391
    %395 = vrot.lane.b32.xlu0 %v393, 32
    %v396 = vpop.permute.xlu0 %395
    %v398 = vadd.f32 %v388, %v396
    %v399 = vtanh.pop %v398
    %401 = vrot.lane.b32.xlu0 %v399, 64
    %v402 = vpop.permute.xlu0 %401
    %v404 = vmul.f32 %v384, %v402
    %v405 = vpack.c.bf16 %v404, %v404
    %v406 = vpack.c.bf16 %v334, %v334
    %408 = vrot.lane.b32.xlu0 %v405, 32
    %v409 = vpop.permute.xlu0 %408
    %v411 = vrot.slane %v406, 7
    %412 = vrot.lane.b32.xlu0 %v411, 64
    %v413 = vpop.permute.xlu0 %412
    %v416 = vsel %vm169, %v409, %v413
    %v418 = vrot.slane %v416, 1
    %v420 = vsel %vm271, %v418, 0
    %422 = vmatprep.subr.bf16.mxu0 0
    %423 = vmatpush1.bf16.msra.mxu0 %v263
    %424 = vmatprep.subr.bf16.mxu0 0
    %425 = vmatpush1.bf16.msra.mxu0 %v264
    %426 = vmatprep.subr.bf16.mxu0 0
    %427 = vmatpush1.bf16.msra.mxu0 %v265
    %428 = vmatprep.subr.bf16.mxu0 0
    %429 = vmatpush1.bf16.msra.mxu0 %v266
    %430 = vmatprep.subr.bf16.mxu0 0
    %431 = vmatpush1.bf16.msra.mxu0 0
    %432 = vmatprep.subr.bf16.mxu0 0
    %433 = vmatpush1.bf16.msra.mxu0 0
    %434 = vmatprep.subr.bf16.mxu0 0
    %435 = vmatpush1.bf16.msra.mxu0 0
    %436 = vmatprep.subr.bf16.mxu0 0
    %437 = vmatpush1.bf16.msra.mxu0 0
    %438 = vmatprep.subr.bf16.mxu0 0
    %439 = vmatpush1.bf16.msra.mxu0 0
    %440 = vmatprep.subr.bf16.mxu0 0
    %441 = vmatpush1.bf16.msra.mxu0 0
    %442 = vmatprep.subr.bf16.mxu0 0
    %443 = vmatpush1.bf16.msra.mxu0 0
    %444 = vmatprep.subr.bf16.mxu0 0
    %445 = vmatpush1.bf16.msra.mxu0 0
    %446 = vmatprep.subr.bf16.mxu0 0
    %447 = vmatpush1.bf16.msra.mxu0 0
    %448 = vmatprep.subr.bf16.mxu0 0
    %449 = vmatpush1.bf16.msra.mxu0 0
    %450 = vmatprep.subr.bf16.mxu0 0
    %451 = vmatpush1.bf16.msra.mxu0 0
    %452 = vmatprep.subr.bf16.mxu0 0
    %453 = vmatpush1.bf16.msra.mxu0 0
    %454 = vmatprep.mubr.bf16.mxu0 0
    %455 = vmatmul.mubr.bf16.gmra.mrb[0].mxu0 %v420
    %v456 = vpop.f32.mrb[0].mxu0
    %v457 = vadd.f32 %v245, %v456
    %v458 = vpop.f32.mrb[0].mxu0
    %v459 = vpop.f32.mrb[0].mxu0
    %v460 = vpop.f32.mrb[0].mxu0
    %461 = vdwg.mxu0
    %v462 = vtanh.pop %v457
    %v463 = vmul.f32 %v462, 0.5
    %v464 = vadd.f32 %v463, 0.5
    %v465 = vsel %vm76, %v462, %v464
    %v466 = vmul.f32 %v465, %v328
    %468 = vrot.lane.b32.xlu0 %v465, 64
    %v469 = vpop.permute.xlu0 %468
    %v471 = vmul.f32 %v465, %v469
    %473 = vrot.lane.b32.xlu0 %v471, 32
    %v474 = vpop.permute.xlu0 %473
    %v476 = vadd.f32 %v466, %v474
    %v477 = vtanh.pop %v476
    %479 = vrot.lane.b32.xlu0 %v477, 64
    %v480 = vpop.permute.xlu0 %479
    %v482 = vmul.f32 %v465, %v480
    %v483 = vrot.slane %v405, 1
    %484 = vrot.lane.b32.xlu0 %v483, 32
    %v485 = vpop.permute.xlu0 %484
    %v487 = vsel %vm169, %v485, 0
    %489 = vmatprep.subr.bf16.mxu0 0
    %490 = vmatpush1.bf16.msra.mxu0 %v165
    %491 = vmatprep.subr.bf16.mxu0 0
    %492 = vmatpush1.bf16.msra.mxu0 %v166
    %493 = vmatprep.subr.bf16.mxu0 0
    %494 = vmatpush1.bf16.msra.mxu0 0
    %495 = vmatprep.subr.bf16.mxu0 0
    %496 = vmatpush1.bf16.msra.mxu0 0
    %497 = vmatprep.subr.bf16.mxu0 0
    %498 = vmatpush1.bf16.msra.mxu0 0
    %499 = vmatprep.subr.bf16.mxu0 0
    %500 = vmatpush1.bf16.msra.mxu0 0
    %501 = vmatprep.subr.bf16.mxu0 0
    %502 = vmatpush1.bf16.msra.mxu0 0
    %503 = vmatprep.subr.bf16.mxu0 0
    %504 = vmatpush1.bf16.msra.mxu0 0
    %505 = vmatprep.subr.bf16.mxu0 0
    %506 = vmatpush1.bf16.msra.mxu0 0
    %507 = vmatprep.subr.bf16.mxu0 0
    %508 = vmatpush1.bf16.msra.mxu0 0
    %509 = vmatprep.subr.bf16.mxu0 0
    %510 = vmatpush1.bf16.msra.mxu0 0
    %511 = vmatprep.subr.bf16.mxu0 0
    %512 = vmatpush1.bf16.msra.mxu0 0
    %513 = vmatprep.subr.bf16.mxu0 0
    %514 = vmatpush1.bf16.msra.mxu0 0
    %515 = vmatprep.subr.bf16.mxu0 0
    %516 = vmatpush1.bf16.msra.mxu0 0
    %517 = vmatprep.subr.bf16.mxu0 0
    %518 = vmatpush1.bf16.msra.mxu0 0
    %519 = vmatprep.subr.bf16.mxu0 0
    %520 = vmatpush1.bf16.msra.mxu0 0
    %521 = vmatprep.mubr.bf16.mxu0 0
    %522 = vmatmul.mubr.bf16.gmra.mrb[0].mxu0 %v487
    %v523 = vpop.f32.mrb[0].mxu0
    %v524 = vadd.f32 0.0, %v523
    %v525 = vpop.f32.mrb[0].mxu0
    %v526 = vpop.f32.mrb[0].mxu0
    %v527 = vpop.f32.mrb[0].mxu0
    %528 = vdwg.mxu0
    %v530 = vrot.slane %v524, 4
    %v532 = vadd.f32 %v138, %v530
    %v533 = vtanh.pop %v532
    %v534 = vmul.f32 %v533, 0.5
    %v535 = vadd.f32 %v534, 0.5
    %v536 = vsel %vm76, %v533, %v535
    %v538 = vrot.slane %v398, 6
    %v540 = vmul.f32 %v536, %v538
    %542 = vrot.lane.b32.xlu0 %v536, 64
    %v543 = vpop.permute.xlu0 %542
    %v545 = vmul.f32 %v536, %v543
    %547 = vrot.lane.b32.xlu0 %v545, 32
    %v548 = vpop.permute.xlu0 %547
    %v550 = vadd.f32 %v540, %v548
    %v551 = vtanh.pop %v550
    %553 = vrot.lane.b32.xlu0 %v551, 64
    %v554 = vpop.permute.xlu0 %553
    %v556 = vmul.f32 %v536, %v554
    %v557 = vpack.c.bf16 %v556, %v556
    %v558 = vpack.c.bf16 %v482, %v482
    %560 = vrot.lane.b32.xlu0 %v557, 32
    %v561 = vpop.permute.xlu0 %560
    %v563 = vrot.slane %v558, 6
    %564 = vrot.lane.b32.xlu0 %v563, 64
    %v565 = vpop.permute.xlu0 %564
    %v568 = vsel %vm169, %v561, %v565
    %v570 = vrot.slane %v568, 2
    %v572 = vsel %vm271, %v570, 0
    %574 = vmatprep.subr.bf16.mxu0 0
    %575 = vmatpush1.bf16.msra.mxu0 %v263
    %576 = vmatprep.subr.bf16.mxu0 0
    %577 = vmatpush1.bf16.msra.mxu0 %v264
    %578 = vmatprep.subr.bf16.mxu0 0
    %579 = vmatpush1.bf16.msra.mxu0 %v265
    %580 = vmatprep.subr.bf16.mxu0 0
    %581 = vmatpush1.bf16.msra.mxu0 %v266
    %582 = vmatprep.subr.bf16.mxu0 0
    %583 = vmatpush1.bf16.msra.mxu0 0
    %584 = vmatprep.subr.bf16.mxu0 0
    %585 = vmatpush1.bf16.msra.mxu0 0
    %586 = vmatprep.subr.bf16.mxu0 0
    %587 = vmatpush1.bf16.msra.mxu0 0
    %588 = vmatprep.subr.bf16.mxu0 0
    %589 = vmatpush1.bf16.msra.mxu0 0
    %590 = vmatprep.subr.bf16.mxu0 0
    %591 = vmatpush1.bf16.msra.mxu0 0
    %592 = vmatprep.subr.bf16.mxu0 0
    %593 = vmatpush1.bf16.msra.mxu0 0
    %594 = vmatprep.subr.bf16.mxu0 0
    %595 = vmatpush1.bf16.msra.mxu0 0
    %596 = vmatprep.subr.bf16.mxu0 0
    %597 = vmatpush1.bf16.msra.mxu0 0
    %598 = vmatprep.subr.bf16.mxu0 0
    %599 = vmatpush1.bf16.msra.mxu0 0
    %600 = vmatprep.subr.bf16.mxu0 0
    %601 = vmatpush1.bf16.msra.mxu0 0
    %602 = vmatprep.subr.bf16.mxu0 0
    %603 = vmatpush1.bf16.msra.mxu0 0
    %604 = vmatprep.subr.bf16.mxu0 0
    %605 = vmatpush1.bf16.msra.mxu0 0
    %606 = vmatprep.mubr.bf16.mxu0 0
    %607 = vmatmul.mubr.bf16.gmra.mrb[0].mxu0 %v572
    %v608 = vpop.f32.mrb[0].mxu0
    %v609 = vadd.f32 %v245, %v608
    %v610 = vpop.f32.mrb[0].mxu0
    %v611 = vpop.f32.mrb[0].mxu0
    %v612 = vpop.f32.mrb[0].mxu0
    %613 = vdwg.mxu0
    %v614 = vtanh.pop %v609
    %v615 = vmul.f32 %v614, 0.5
    %v616 = vadd.f32 %v615, 0.5
    %v617 = vsel %vm76, %v614, %v616
    %v618 = vmul.f32 %v617, %v476
    %620 = vrot.lane.b32.xlu0 %v617, 64
    %v621 = vpop.permute.xlu0 %620
    %v623 = vmul.f32 %v617, %v621
    %625 = vrot.lane.b32.xlu0 %v623, 32
    %v626 = vpop.permute.xlu0 %625
    %v628 = vadd.f32 %v618, %v626
    %v629 = vtanh.pop %v628
    %631 = vrot.lane.b32.xlu0 %v629, 64
    %v632 = vpop.permute.xlu0 %631
    %v634 = vmul.f32 %v617, %v632
    %v635 = vrot.slane %v557, 2
    %636 = vrot.lane.b32.xlu0 %v635, 32
    %v637 = vpop.permute.xlu0 %636
    %v639 = vsel %vm169, %v637, 0
    %641 = vmatprep.subr.bf16.mxu0 0
    %642 = vmatpush1.bf16.msra.mxu0 %v165
    %643 = vmatprep.subr.bf16.mxu0 0
    %644 = vmatpush1.bf16.msra.mxu0 %v166
    %645 = vmatprep.subr.bf16.mxu0 0
    %646 = vmatpush1.bf16.msra.mxu0 0
    %647 = vmatprep.subr.bf16.mxu0 0
    %648 = vmatpush1.bf16.msra.mxu0 0
    %649 = vmatprep.subr.bf16.mxu0 0
    %650 = vmatpush1.bf16.msra.mxu0 0
    %651 = vmatprep.subr.bf16.mxu0 0
    %652 = vmatpush1.bf16.msra.mxu0 0
    %653 = vmatprep.subr.bf16.mxu0 0
    %654 = vmatpush1.bf16.msra.mxu0 0
    %655 = vmatprep.subr.bf16.mxu0 0
    %656 = vmatpush1.bf16.msra.mxu0 0
    %657 = vmatprep.subr.bf16.mxu0 0
    %658 = vmatpush1.bf16.msra.mxu0 0
    %659 = vmatprep.subr.bf16.mxu0 0
    %660 = vmatpush1.bf16.msra.mxu0 0
    %661 = vmatprep.subr.bf16.mxu0 0
    %662 = vmatpush1.bf16.msra.mxu0 0
    %663 = vmatprep.subr.bf16.mxu0 0
    %664 = vmatpush1.bf16.msra.mxu0 0
    %665 = vmatprep.subr.bf16.mxu0 0
    %666 = vmatpush1.bf16.msra.mxu0 0
    %667 = vmatprep.subr.bf16.mxu0 0
    %668 = vmatpush1.bf16.msra.mxu0 0
    %669 = vmatprep.subr.bf16.mxu0 0
    %670 = vmatpush1.bf16.msra.mxu0 0
    %671 = vmatprep.subr.bf16.mxu0 0
    %672 = vmatpush1.bf16.msra.mxu0 0
    %673 = vmatprep.mubr.bf16.mxu0 0
    %674 = vmatmul.mubr.bf16.gmra.mrb[0].mxu0 %v639
    %v675 = vpop.f32.mrb[0].mxu0
    %v676 = vadd.f32 0.0, %v675
    %v677 = vpop.f32.mrb[0].mxu0
    %v678 = vpop.f32.mrb[0].mxu0
    %v679 = vpop.f32.mrb[0].mxu0
    %680 = vdwg.mxu0
    %v682 = vrot.slane %v676, 2
    %v684 = vadd.f32 %v138, %v682
    %v685 = vtanh.pop %v684
    %v686 = vmul.f32 %v685, 0.5
    %v687 = vadd.f32 %v686, 0.5
    %v688 = vsel %vm76, %v685, %v687
    %v690 = vrot.slane %v550, 6
    %v692 = vmul.f32 %v688, %v690
    %694 = vrot.lane.b32.xlu0 %v688, 64
    %v695 = vpop.permute.xlu0 %694
    %v697 = vmul.f32 %v688, %v695
    %699 = vrot.lane.b32.xlu0 %v697, 32
    %v700 = vpop.permute.xlu0 %699
    %v702 = vadd.f32 %v692, %v700
    %v703 = vtanh.pop %v702
    %705 = vrot.lane.b32.xlu0 %v703, 64
    %v706 = vpop.permute.xlu0 %705
    %v708 = vmul.f32 %v688, %v706
    %v709 = vpack.c.bf16 %v708, %v708
    %v710 = vpack.c.bf16 %v634, %v634
    %712 = vrot.lane.b32.xlu0 %v709, 32
    %v713 = vpop.permute.xlu0 %712
    %v715 = vrot.slane %v710, 5
    %716 = vrot.lane.b32.xlu0 %v715, 64
    %v717 = vpop.permute.xlu0 %716
    %v720 = vsel %vm169, %v713, %v717
    %v722 = vrot.slane %v720, 3
    %v724 = vsel %vm271, %v722, 0
    %726 = vmatprep.subr.bf16.mxu0 0
    %727 = vmatpush1.bf16.msra.mxu0 %v263
    %728 = vmatprep.subr.bf16.mxu0 0
    %729 = vmatpush1.bf16.msra.mxu0 %v264
    %730 = vmatprep.subr.bf16.mxu0 0
    %731 = vmatpush1.bf16.msra.mxu0 %v265
    %732 = vmatprep.subr.bf16.mxu0 0
    %733 = vmatpush1.bf16.msra.mxu0 %v266
    %734 = vmatprep.subr.bf16.mxu0 0
    %735 = vmatpush1.bf16.msra.mxu0 0
    %736 = vmatprep.subr.bf16.mxu0 0
    %737 = vmatpush1.bf16.msra.mxu0 0
    %738 = vmatprep.subr.bf16.mxu0 0
    %739 = vmatpush1.bf16.msra.mxu0 0
    %740 = vmatprep.subr.bf16.mxu0 0
    %741 = vmatpush1.bf16.msra.mxu0 0
    %742 = vmatprep.subr.bf16.mxu0 0
    %743 = vmatpush1.bf16.msra.mxu0 0
    %744 = vmatprep.subr.bf16.mxu0 0
    %745 = vmatpush1.bf16.msra.mxu0 0
    %746 = vmatprep.subr.bf16.mxu0 0
    %747 = vmatpush1.bf16.msra.mxu0 0
    %748 = vmatprep.subr.bf16.mxu0 0
    %749 = vmatpush1.bf16.msra.mxu0 0
    %750 = vmatprep.subr.bf16.mxu0 0
    %751 = vmatpush1.bf16.msra.mxu0 0
    %752 = vmatprep.subr.bf16.mxu0 0
    %753 = vmatpush1.bf16.msra.mxu0 0
    %754 = vmatprep.subr.bf16.mxu0 0
    %755 = vmatpush1.bf16.msra.mxu0 0
    %756 = vmatprep.subr.bf16.mxu0 0
    %757 = vmatpush1.bf16.msra.mxu0 0
    %758 = vmatprep.mubr.bf16.mxu0 0
    %759 = vmatmul.mubr.bf16.gmra.mrb[0].mxu0 %v724
    %v760 = vpop.f32.mrb[0].mxu0
    %v761 = vadd.f32 %v245, %v760
    %v762 = vpop.f32.mrb[0].mxu0
    %v763 = vpop.f32.mrb[0].mxu0
    %v764 = vpop.f32.mrb[0].mxu0
    %765 = vdwg.mxu0
    %v766 = vtanh.pop %v761
    %v767 = vmul.f32 %v766, 0.5
    %v768 = vadd.f32 %v767, 0.5
    %v769 = vsel %vm76, %v766, %v768
    %v770 = vmul.f32 %v769, %v628
    %772 = vrot.lane.b32.xlu0 %v769, 64
    %v773 = vpop.permute.xlu0 %772
    %v775 = vmul.f32 %v769, %v773
    %777 = vrot.lane.b32.xlu0 %v775, 32
    %v778 = vpop.permute.xlu0 %777
    %v780 = vadd.f32 %v770, %v778
    %v781 = vtanh.pop %v780
    %783 = vrot.lane.b32.xlu0 %v781, 64
    %v784 = vpop.permute.xlu0 %783
    %v786 = vmul.f32 %v769, %v784
    %v787 = vrot.slane %v709, 3
    %788 = vrot.lane.b32.xlu0 %v787, 32
    %v789 = vpop.permute.xlu0 %788
    %v791 = vsel %vm169, %v789, 0
    %793 = vmatprep.subr.bf16.mxu0 0
    %794 = vmatpush1.bf16.msra.mxu0 %v165
    %795 = vmatprep.subr.bf16.mxu0 0
    %796 = vmatpush1.bf16.msra.mxu0 %v166
    %797 = vmatprep.subr.bf16.mxu0 0
    %798 = vmatpush1.bf16.msra.mxu0 0
    %799 = vmatprep.subr.bf16.mxu0 0
    %800 = vmatpush1.bf16.msra.mxu0 0
    %801 = vmatprep.subr.bf16.mxu0 0
    %802 = vmatpush1.bf16.msra.mxu0 0
    %803 = vmatprep.subr.bf16.mxu0 0
    %804 = vmatpush1.bf16.msra.mxu0 0
    %805 = vmatprep.subr.bf16.mxu0 0
    %806 = vmatpush1.bf16.msra.mxu0 0
    %807 = vmatprep.subr.bf16.mxu0 0
    %808 = vmatpush1.bf16.msra.mxu0 0
    %809 = vmatprep.subr.bf16.mxu0 0
    %810 = vmatpush1.bf16.msra.mxu0 0
    %811 = vmatprep.subr.bf16.mxu0 0
    %812 = vmatpush1.bf16.msra.mxu0 0
    %813 = vmatprep.subr.bf16.mxu0 0
    %814 = vmatpush1.bf16.msra.mxu0 0
    %815 = vmatprep.subr.bf16.mxu0 0
    %816 = vmatpush1.bf16.msra.mxu0 0
    %817 = vmatprep.subr.bf16.mxu0 0
    %818 = vmatpush1.bf16.msra.mxu0 0
    %819 = vmatprep.subr.bf16.mxu0 0
    %820 = vmatpush1.bf16.msra.mxu0 0
    %821 = vmatprep.subr.bf16.mxu0 0
    %822 = vmatpush1.bf16.msra.mxu0 0
    %823 = vmatprep.subr.bf16.mxu0 0
    %824 = vmatpush1.bf16.msra.mxu0 0
    %825 = vmatprep.mubr.bf16.mxu0 0
    %826 = vmatmul.mubr.bf16.gmra.mrb[0].mxu0 %v791
    %v827 = vpop.f32.mrb[0].mxu0
    %v828 = vadd.f32 0.0, %v827
    %v829 = vpop.f32.mrb[0].mxu0
    %v830 = vpop.f32.mrb[0].mxu0
    %v831 = vpop.f32.mrb[0].mxu0
    %832 = vdwg.mxu0
    %v833 = vadd.f32 %v141, %v828
    %v834 = vtanh.pop %v833
    %v835 = vmul.f32 %v834, 0.5
    %v836 = vadd.f32 %v835, 0.5
    %v837 = vsel %vm76, %v834, %v836
    %v839 = vrot.slane %v702, 6
    %v841 = vmul.f32 %v837, %v839
    %843 = vrot.lane.b32.xlu0 %v837, 64
    %v844 = vpop.permute.xlu0 %843
    %v846 = vmul.f32 %v837, %v844
    %848 = vrot.lane.b32.xlu0 %v846, 32
    %v849 = vpop.permute.xlu0 %848
    %v851 = vadd.f32 %v841, %v849
    %v852 = vtanh.pop %v851
    %854 = vrot.lane.b32.xlu0 %v852, 64
    %v855 = vpop.permute.xlu0 %854
    %v857 = vmul.f32 %v837, %v855
    %v858 = vpack.c.bf16 %v857, %v857
    %v859 = vpack.c.bf16 %v786, %v786
    %861 = vrot.lane.b32.xlu0 %v858, 32
    %v862 = vpop.permute.xlu0 %861
    %864 = vrot.lane.b32.xlu0 %v859, 64
    %v865 = vpop.permute.xlu0 %864
    %v868 = vsel %vm169, %v862, %v865
    %v869 = vsel %vm271, %v868, 0
    %871 = vmatprep.subr.bf16.mxu0 0
    %872 = vmatpush1.bf16.msra.mxu0 %v263
    %873 = vmatprep.subr.bf16.mxu0 0
    %874 = vmatpush1.bf16.msra.mxu0 %v264
    %875 = vmatprep.subr.bf16.mxu0 0
    %876 = vmatpush1.bf16.msra.mxu0 %v265
    %877 = vmatprep.subr.bf16.mxu0 0
    %878 = vmatpush1.bf16.msra.mxu0 %v266
    %879 = vmatprep.subr.bf16.mxu0 0
    %880 = vmatpush1.bf16.msra.mxu0 0
    %881 = vmatprep.subr.bf16.mxu0 0
    %882 = vmatpush1.bf16.msra.mxu0 0
    %883 = vmatprep.subr.bf16.mxu0 0
    %884 = vmatpush1.bf16.msra.mxu0 0
    %885 = vmatprep.subr.bf16.mxu0 0
    %886 = vmatpush1.bf16.msra.mxu0 0
    %887 = vmatprep.subr.bf16.mxu0 0
    %888 = vmatpush1.bf16.msra.mxu0 0
    %889 = vmatprep.subr.bf16.mxu0 0
    %890 = vmatpush1.bf16.msra.mxu0 0
    %891 = vmatprep.subr.bf16.mxu0 0
    %892 = vmatpush1.bf16.msra.mxu0 0
    %893 = vmatprep.subr.bf16.mxu0 0
    %894 = vmatpush1.bf16.msra.mxu0 0
    %895 = vmatprep.subr.bf16.mxu0 0
    %896 = vmatpush1.bf16.msra.mxu0 0
    %897 = vmatprep.subr.bf16.mxu0 0
    %898 = vmatpush1.bf16.msra.mxu0 0
    %899 = vmatprep.subr.bf16.mxu0 0
    %900 = vmatpush1.bf16.msra.mxu0 0
    %901 = vmatprep.subr.bf16.mxu0 0
    %902 = vmatpush1.bf16.msra.mxu0 0
    %903 = vmatprep.mubr.bf16.mxu0 0
    %904 = vmatmul.mubr.bf16.gmra.mrb[0].mxu0 %v869
    %v905 = vpop.f32.mrb[0].mxu0
    %v906 = vadd.f32 %v245, %v905
    %v907 = vpop.f32.mrb[0].mxu0
    %v908 = vpop.f32.mrb[0].mxu0
    %v909 = vpop.f32.mrb[0].mxu0
    %910 = vdwg.mxu0
    %v911 = vtanh.pop %v906
    %v912 = vmul.f32 %v911, 0.5
    %v913 = vadd.f32 %v912, 0.5
    %v914 = vsel %vm76, %v911, %v913
    %v915 = vmul.f32 %v914, %v780
    %917 = vrot.lane.b32.xlu0 %v914, 64
    %v918 = vpop.permute.xlu0 %917
    %v920 = vmul.f32 %v914, %v918
    %922 = vrot.lane.b32.xlu0 %v920, 32
    %v923 = vpop.permute.xlu0 %922
    %v925 = vadd.f32 %v915, %v923
    %v926 = vtanh.pop %v925
    %928 = vrot.lane.b32.xlu0 %v926, 64
    %v929 = vpop.permute.xlu0 %928
    %v931 = vmul.f32 %v914, %v929
    %v932 = vsel %vm169, %v862, 0
    %934 = vmatprep.subr.bf16.mxu0 0
    %935 = vmatpush1.bf16.msra.mxu0 %v165
    %936 = vmatprep.subr.bf16.mxu0 0
    %937 = vmatpush1.bf16.msra.mxu0 %v166
    %938 = vmatprep.subr.bf16.mxu0 0
    %939 = vmatpush1.bf16.msra.mxu0 0
    %940 = vmatprep.subr.bf16.mxu0 0
    %941 = vmatpush1.bf16.msra.mxu0 0
    %942 = vmatprep.subr.bf16.mxu0 0
    %943 = vmatpush1.bf16.msra.mxu0 0
    %944 = vmatprep.subr.bf16.mxu0 0
    %945 = vmatpush1.bf16.msra.mxu0 0
    %946 = vmatprep.subr.bf16.mxu0 0
    %947 = vmatpush1.bf16.msra.mxu0 0
    %948 = vmatprep.subr.bf16.mxu0 0
    %949 = vmatpush1.bf16.msra.mxu0 0
    %950 = vmatprep.subr.bf16.mxu0 0
    %951 = vmatpush1.bf16.msra.mxu0 0
    %952 = vmatprep.subr.bf16.mxu0 0
    %953 = vmatpush1.bf16.msra.mxu0 0
    %954 = vmatprep.subr.bf16.mxu0 0
    %955 = vmatpush1.bf16.msra.mxu0 0
    %956 = vmatprep.subr.bf16.mxu0 0
    %957 = vmatpush1.bf16.msra.mxu0 0
    %958 = vmatprep.subr.bf16.mxu0 0
    %959 = vmatpush1.bf16.msra.mxu0 0
    %960 = vmatprep.subr.bf16.mxu0 0
    %961 = vmatpush1.bf16.msra.mxu0 0
    %962 = vmatprep.subr.bf16.mxu0 0
    %963 = vmatpush1.bf16.msra.mxu0 0
    %964 = vmatprep.subr.bf16.mxu0 0
    %965 = vmatpush1.bf16.msra.mxu0 0
    %966 = vmatprep.mubr.bf16.mxu0 0
    %967 = vmatmul.mubr.bf16.gmra.mrb[0].mxu0 %v932
    %v968 = vpop.f32.mrb[0].mxu0
    %v969 = vadd.f32 0.0, %v968
    %v970 = vpop.f32.mrb[0].mxu0
    %v971 = vpop.f32.mrb[0].mxu0
    %v972 = vpop.f32.mrb[0].mxu0
    %973 = vdwg.mxu0
    %v975 = vrot.slane %v969, 6
    %v977 = vadd.f32 %v141, %v975
    %v978 = vtanh.pop %v977
    %v979 = vmul.f32 %v978, 0.5
    %v980 = vadd.f32 %v979, 0.5
    %v981 = vsel %vm76, %v978, %v980
    %v983 = vrot.slane %v851, 6
    %v985 = vmul.f32 %v981, %v983
    %987 = vrot.lane.b32.xlu0 %v981, 64
    %v988 = vpop.permute.xlu0 %987
    %v990 = vmul.f32 %v981, %v988
    %992 = vrot.lane.b32.xlu0 %v990, 32
    %v993 = vpop.permute.xlu0 %992
    %v995 = vadd.f32 %v985, %v993
    %v996 = vtanh.pop %v995
    %998 = vrot.lane.b32.xlu0 %v996, 64
    %v999 = vpop.permute.xlu0 %998
    %v1001 = vmul.f32 %v981, %v999
    %v1002 = vpack.c.bf16 %v1001, %v1001
    %v1003 = vpack.c.bf16 %v931, %v931
    %1005 = vrot.lane.b32.xlu0 %v1002, 32
    %v1006 = vpop.permute.xlu0 %1005
    %v1008 = vrot.slane %v1003, 7
    %1009 = vrot.lane.b32.xlu0 %v1008, 64
    %v1010 = vpop.permute.xlu0 %1009
    %v1013 = vsel %vm169, %v1006, %v1010
    %v1015 = vrot.slane %v1013, 1
    %v1017 = vsel %vm271, %v1015, 0
    %1019 = vmatprep.subr.bf16.mxu0 0
    %1020 = vmatpush1.bf16.msra.mxu0 %v263
    %1021 = vmatprep.subr.bf16.mxu0 0
    %1022 = vmatpush1.bf16.msra.mxu0 %v264
    %1023 = vmatprep.subr.bf16.mxu0 0
    %1024 = vmatpush1.bf16.msra.mxu0 %v265
    %1025 = vmatprep.subr.bf16.mxu0 0
    %1026 = vmatpush1.bf16.msra.mxu0 %v266
    %1027 = vmatprep.subr.bf16.mxu0 0
    %1028 = vmatpush1.bf16.msra.mxu0 0
    %1029 = vmatprep.subr.bf16.mxu0 0
    %1030 = vmatpush1.bf16.msra.mxu0 0
    %1031 = vmatprep.subr.bf16.mxu0 0
    %1032 = vmatpush1.bf16.msra.mxu0 0
    %1033 = vmatprep.subr.bf16.mxu0 0
    %1034 = vmatpush1.bf16.msra.mxu0 0
    %1035 = vmatprep.subr.bf16.mxu0 0
    %1036 = vmatpush1.bf16.msra.mxu0 0
    %1037 = vmatprep.subr.bf16.mxu0 0
    %1038 = vmatpush1.bf16.msra.mxu0 0
    %1039 = vmatprep.subr.bf16.mxu0 0
    %1040 = vmatpush1.bf16.msra.mxu0 0
    %1041 = vmatprep.subr.bf16.mxu0 0
    %1042 = vmatpush1.bf16.msra.mxu0 0
    %1043 = vmatprep.subr.bf16.mxu0 0
    %1044 = vmatpush1.bf16.msra.mxu0 0
    %1045 = vmatprep.subr.bf16.mxu0 0
    %1046 = vmatpush1.bf16.msra.mxu0 0
    %1047 = vmatprep.subr.bf16.mxu0 0
    %1048 = vmatpush1.bf16.msra.mxu0 0
    %1049 = vmatprep.subr.bf16.mxu0 0
    %1050 = vmatpush1.bf16.msra.mxu0 0
    %1051 = vmatprep.mubr.bf16.mxu0 0
    %1052 = vmatmul.mubr.bf16.gmra.mrb[0].mxu0 %v1017
    %v1053 = vpop.f32.mrb[0].mxu0
    %v1054 = vadd.f32 %v245, %v1053
    %v1055 = vpop.f32.mrb[0].mxu0
    %v1056 = vpop.f32.mrb[0].mxu0
    %v1057 = vpop.f32.mrb[0].mxu0
    %1058 = vdwg.mxu0
    %v1059 = vtanh.pop %v1054
    %v1060 = vmul.f32 %v1059, 0.5
    %v1061 = vadd.f32 %v1060, 0.5
    %v1062 = vsel %vm76, %v1059, %v1061
    %v1063 = vmul.f32 %v1062, %v925
    %1065 = vrot.lane.b32.xlu0 %v1062, 64
    %v1066 = vpop.permute.xlu0 %1065
    %v1068 = vmul.f32 %v1062, %v1066
    %1070 = vrot.lane.b32.xlu0 %v1068, 32
    %v1071 = vpop.permute.xlu0 %1070
    %v1073 = vadd.f32 %v1063, %v1071
    %v1074 = vtanh.pop %v1073
    %1076 = vrot.lane.b32.xlu0 %v1074, 64
    %v1077 = vpop.permute.xlu0 %1076
    %v1079 = vmul.f32 %v1062, %v1077
    %v1080 = vrot.slane %v1002, 1
    %1081 = vrot.lane.b32.xlu0 %v1080, 32
    %v1082 = vpop.permute.xlu0 %1081
    %v1084 = vsel %vm169, %v1082, 0
    %1086 = vmatprep.subr.bf16.mxu0 0
    %1087 = vmatpush1.bf16.msra.mxu0 %v165
    %1088 = vmatprep.subr.bf16.mxu0 0
    %1089 = vmatpush1.bf16.msra.mxu0 %v166
    %1090 = vmatprep.subr.bf16.mxu0 0
    %1091 = vmatpush1.bf16.msra.mxu0 0
    %1092 = vmatprep.subr.bf16.mxu0 0
    %1093 = vmatpush1.bf16.msra.mxu0 0
    %1094 = vmatprep.subr.bf16.mxu0 0
    %1095 = vmatpush1.bf16.msra.mxu0 0
    %1096 = vmatprep.subr.bf16.mxu0 0
    %1097 = vmatpush1.bf16.msra.mxu0 0
    %1098 = vmatprep.subr.bf16.mxu0 0
    %1099 = vmatpush1.bf16.msra.mxu0 0
    %1100 = vmatprep.subr.bf16.mxu0 0
    %1101 = vmatpush1.bf16.msra.mxu0 0
    %1102 = vmatprep.subr.bf16.mxu0 0
    %1103 = vmatpush1.bf16.msra.mxu0 0
    %1104 = vmatprep.subr.bf16.mxu0 0
    %1105 = vmatpush1.bf16.msra.mxu0 0
    %1106 = vmatprep.subr.bf16.mxu0 0
    %1107 = vmatpush1.bf16.msra.mxu0 0
    %1108 = vmatprep.subr.bf16.mxu0 0
    %1109 = vmatpush1.bf16.msra.mxu0 0
    %1110 = vmatprep.subr.bf16.mxu0 0
    %1111 = vmatpush1.bf16.msra.mxu0 0
    %1112 = vmatprep.subr.bf16.mxu0 0
    %1113 = vmatpush1.bf16.msra.mxu0 0
    %1114 = vmatprep.subr.bf16.mxu0 0
    %1115 = vmatpush1.bf16.msra.mxu0 0
    %1116 = vmatprep.subr.bf16.mxu0 0
    %1117 = vmatpush1.bf16.msra.mxu0 0
    %1118 = vmatprep.mubr.bf16.mxu0 0
    %1119 = vmatmul.mubr.bf16.gmra.mrb[0].mxu0 %v1084
    %v1120 = vpop.f32.mrb[0].mxu0
    %v1121 = vadd.f32 0.0, %v1120
    %v1122 = vpop.f32.mrb[0].mxu0
    %v1123 = vpop.f32.mrb[0].mxu0
    %v1124 = vpop.f32.mrb[0].mxu0
    %1125 = vdwg.mxu0
    %v1127 = vrot.slane %v1121, 4
    %v1129 = vadd.f32 %v141, %v1127
    %v1130 = vtanh.pop %v1129
    %v1131 = vmul.f32 %v1130, 0.5
    %v1132 = vadd.f32 %v1131, 0.5
    %v1133 = vsel %vm76, %v1130, %v1132
    %v1135 = vrot.slane %v995, 6
    %v1137 = vmul.f32 %v1133, %v1135
    %1139 = vrot.lane.b32.xlu0 %v1133, 64
    %v1140 = vpop.permute.xlu0 %1139
    %v1142 = vmul.f32 %v1133, %v1140
    %1144 = vrot.lane.b32.xlu0 %v1142, 32
    %v1145 = vpop.permute.xlu0 %1144
    %v1147 = vadd.f32 %v1137, %v1145
    %v1148 = vtanh.pop %v1147
    %1150 = vrot.lane.b32.xlu0 %v1148, 64
    %v1151 = vpop.permute.xlu0 %1150
    %v1153 = vmul.f32 %v1133, %v1151
    %v1154 = vpack.c.bf16 %v1153, %v1153
    %v1155 = vpack.c.bf16 %v1079, %v1079
    %1157 = vrot.lane.b32.xlu0 %v1154, 32
    %v1158 = vpop.permute.xlu0 %1157
    %v1160 = vrot.slane %v1155, 6
    %1161 = vrot.lane.b32.xlu0 %v1160, 64
    %v1162 = vpop.permute.xlu0 %1161
    %v1165 = vsel %vm169, %v1158, %v1162
    %v1167 = vrot.slane %v1165, 2
    %v1169 = vsel %vm271, %v1167, 0
    %1171 = vmatprep.subr.bf16.mxu0 0
    %1172 = vmatpush1.bf16.msra.mxu0 %v263
    %1173 = vmatprep.subr.bf16.mxu0 0
    %1174 = vmatpush1.bf16.msra.mxu0 %v264
    %1175 = vmatprep.subr.bf16.mxu0 0
    %1176 = vmatpush1.bf16.msra.mxu0 %v265
    %1177 = vmatprep.subr.bf16.mxu0 0
    %1178 = vmatpush1.bf16.msra.mxu0 %v266
    %1179 = vmatprep.subr.bf16.mxu0 0
    %1180 = vmatpush1.bf16.msra.mxu0 0
    %1181 = vmatprep.subr.bf16.mxu0 0
    %1182 = vmatpush1.bf16.msra.mxu0 0
    %1183 = vmatprep.subr.bf16.mxu0 0
    %1184 = vmatpush1.bf16.msra.mxu0 0
    %1185 = vmatprep.subr.bf16.mxu0 0
    %1186 = vmatpush1.bf16.msra.mxu0 0
    %1187 = vmatprep.subr.bf16.mxu0 0
    %1188 = vmatpush1.bf16.msra.mxu0 0
    %1189 = vmatprep.subr.bf16.mxu0 0
    %1190 = vmatpush1.bf16.msra.mxu0 0
    %1191 = vmatprep.subr.bf16.mxu0 0
    %1192 = vmatpush1.bf16.msra.mxu0 0
    %1193 = vmatprep.subr.bf16.mxu0 0
    %1194 = vmatpush1.bf16.msra.mxu0 0
    %1195 = vmatprep.subr.bf16.mxu0 0
    %1196 = vmatpush1.bf16.msra.mxu0 0
    %1197 = vmatprep.subr.bf16.mxu0 0
    %1198 = vmatpush1.bf16.msra.mxu0 0
    %1199 = vmatprep.subr.bf16.mxu0 0
    %1200 = vmatpush1.bf16.msra.mxu0 0
    %1201 = vmatprep.subr.bf16.mxu0 0
    %1202 = vmatpush1.bf16.msra.mxu0 0
    %1203 = vmatprep.mubr.bf16.mxu0 0
    %1204 = vmatmul.mubr.bf16.gmra.mrb[0].mxu0 %v1169
    %v1205 = vpop.f32.mrb[0].mxu0
    %v1206 = vadd.f32 %v245, %v1205
    %v1207 = vpop.f32.mrb[0].mxu0
    %v1208 = vpop.f32.mrb[0].mxu0
    %v1209 = vpop.f32.mrb[0].mxu0
    %1210 = vdwg.mxu0
    %v1211 = vtanh.pop %v1206
    %v1212 = vmul.f32 %v1211, 0.5
    %v1213 = vadd.f32 %v1212, 0.5
    %v1214 = vsel %vm76, %v1211, %v1213
    %v1215 = vmul.f32 %v1214, %v1073
    %1217 = vrot.lane.b32.xlu0 %v1214, 64
    %v1218 = vpop.permute.xlu0 %1217
    %v1220 = vmul.f32 %v1214, %v1218
    %1222 = vrot.lane.b32.xlu0 %v1220, 32
    %v1223 = vpop.permute.xlu0 %1222
    %v1225 = vadd.f32 %v1215, %v1223
    %v1226 = vtanh.pop %v1225
    %1228 = vrot.lane.b32.xlu0 %v1226, 64
    %v1229 = vpop.permute.xlu0 %1228
    %v1231 = vmul.f32 %v1214, %v1229
    %v1232 = vrot.slane %v1154, 2
    %1233 = vrot.lane.b32.xlu0 %v1232, 32
    %v1234 = vpop.permute.xlu0 %1233
    %v1236 = vsel %vm169, %v1234, 0
    %1238 = vmatprep.subr.bf16.mxu0 0
    %1239 = vmatpush1.bf16.msra.mxu0 %v165
    %1240 = vmatprep.subr.bf16.mxu0 0
    %1241 = vmatpush1.bf16.msra.mxu0 %v166
    %1242 = vmatprep.subr.bf16.mxu0 0
    %1243 = vmatpush1.bf16.msra.mxu0 0
    %1244 = vmatprep.subr.bf16.mxu0 0
    %1245 = vmatpush1.bf16.msra.mxu0 0
    %1246 = vmatprep.subr.bf16.mxu0 0
    %1247 = vmatpush1.bf16.msra.mxu0 0
    %1248 = vmatprep.subr.bf16.mxu0 0
    %1249 = vmatpush1.bf16.msra.mxu0 0
    %1250 = vmatprep.subr.bf16.mxu0 0
    %1251 = vmatpush1.bf16.msra.mxu0 0
    %1252 = vmatprep.subr.bf16.mxu0 0
    %1253 = vmatpush1.bf16.msra.mxu0 0
    %1254 = vmatprep.subr.bf16.mxu0 0
    %1255 = vmatpush1.bf16.msra.mxu0 0
    %1256 = vmatprep.subr.bf16.mxu0 0
    %1257 = vmatpush1.bf16.msra.mxu0 0
    %1258 = vmatprep.subr.bf16.mxu0 0
    %1259 = vmatpush1.bf16.msra.mxu0 0
    %1260 = vmatprep.subr.bf16.mxu0 0
    %1261 = vmatpush1.bf16.msra.mxu0 0
    %1262 = vmatprep.subr.bf16.mxu0 0
    %1263 = vmatpush1.bf16.msra.mxu0 0
    %1264 = vmatprep.subr.bf16.mxu0 0
    %1265 = vmatpush1.bf16.msra.mxu0 0
    %1266 = vmatprep.subr.bf16.mxu0 0
    %1267 = vmatpush1.bf16.msra.mxu0 0
    %1268 = vmatprep.subr.bf16.mxu0 0
    %1269 = vmatpush1.bf16.msra.mxu0 0
    %1270 = vmatprep.mubr.bf16.mxu0 0
    %1271 = vmatmul.mubr.bf16.gmra.mrb[0].mxu0 %v1236
    %v1272 = vpop.f32.mrb[0].mxu0
    %v1273 = vadd.f32 0.0, %v1272
    %v1274 = vpop.f32.mrb[0].mxu0
    %v1275 = vpop.f32.mrb[0].mxu0
    %v1276 = vpop.f32.mrb[0].mxu0
    %1277 = vdwg.mxu0
    %v1279 = vrot.slane %v1273, 2
    %v1281 = vadd.f32 %v141, %v1279
    %v1282 = vtanh.pop %v1281
    %v1283 = vmul.f32 %v1282, 0.5
    %v1284 = vadd.f32 %v1283, 0.5
    %v1285 = vsel %vm76, %v1282, %v1284
    %v1287 = vrot.slane %v1147, 6
    %v1289 = vmul.f32 %v1285, %v1287
    %1291 = vrot.lane.b32.xlu0 %v1285, 64
    %v1292 = vpop.permute.xlu0 %1291
    %v1294 = vmul.f32 %v1285, %v1292
    %1296 = vrot.lane.b32.xlu0 %v1294, 32
    %v1297 = vpop.permute.xlu0 %1296
    %v1299 = vadd.f32 %v1289, %v1297
    %v1300 = vtanh.pop %v1299
    %1302 = vrot.lane.b32.xlu0 %v1300, 64
    %v1303 = vpop.permute.xlu0 %1302
    %v1305 = vmul.f32 %v1285, %v1303
    %v1306 = vpack.c.bf16 %v1305, %v1305
    %v1307 = vpack.c.bf16 %v1231, %v1231
    %1309 = vrot.lane.b32.xlu0 %v1306, 32
    %v1310 = vpop.permute.xlu0 %1309
    %v1312 = vrot.slane %v1307, 5
    %1313 = vrot.lane.b32.xlu0 %v1312, 64
    %v1314 = vpop.permute.xlu0 %1313
    %v1317 = vsel %vm169, %v1310, %v1314
    %v1319 = vrot.slane %v1317, 3
    %v1321 = vsel %vm271, %v1319, 0
    %1323 = vmatprep.subr.bf16.mxu0 0
    %1324 = vmatpush1.bf16.msra.mxu0 %v263
    %1325 = vmatprep.subr.bf16.mxu0 0
    %1326 = vmatpush1.bf16.msra.mxu0 %v264
    %1327 = vmatprep.subr.bf16.mxu0 0
    %1328 = vmatpush1.bf16.msra.mxu0 %v265
    %1329 = vmatprep.subr.bf16.mxu0 0
    %1330 = vmatpush1.bf16.msra.mxu0 %v266
    %1331 = vmatprep.subr.bf16.mxu0 0
    %1332 = vmatpush1.bf16.msra.mxu0 0
    %1333 = vmatprep.subr.bf16.mxu0 0
    %1334 = vmatpush1.bf16.msra.mxu0 0
    %1335 = vmatprep.subr.bf16.mxu0 0
    %1336 = vmatpush1.bf16.msra.mxu0 0
    %1337 = vmatprep.subr.bf16.mxu0 0
    %1338 = vmatpush1.bf16.msra.mxu0 0
    %1339 = vmatprep.subr.bf16.mxu0 0
    %1340 = vmatpush1.bf16.msra.mxu0 0
    %1341 = vmatprep.subr.bf16.mxu0 0
    %1342 = vmatpush1.bf16.msra.mxu0 0
    %1343 = vmatprep.subr.bf16.mxu0 0
    %1344 = vmatpush1.bf16.msra.mxu0 0
    %1345 = vmatprep.subr.bf16.mxu0 0
    %1346 = vmatpush1.bf16.msra.mxu0 0
    %1347 = vmatprep.subr.bf16.mxu0 0
    %1348 = vmatpush1.bf16.msra.mxu0 0
    %1349 = vmatprep.subr.bf16.mxu0 0
    %1350 = vmatpush1.bf16.msra.mxu0 0
    %1351 = vmatprep.subr.bf16.mxu0 0
    %1352 = vmatpush1.bf16.msra.mxu0 0
    %1353 = vmatprep.subr.bf16.mxu0 0
    %1354 = vmatpush1.bf16.msra.mxu0 0
    %1355 = vmatprep.mubr.bf16.mxu0 0
    %1356 = vmatmul.mubr.bf16.gmra.mrb[0].mxu0 %v1321
    %v1357 = vpop.f32.mrb[0].mxu0
    %v1358 = vadd.f32 %v245, %v1357
    %v1359 = vpop.f32.mrb[0].mxu0
    %v1360 = vpop.f32.mrb[0].mxu0
    %v1361 = vpop.f32.mrb[0].mxu0
    %1362 = vdwg.mxu0
    %v1363 = vtanh.pop %v1358
    %v1364 = vmul.f32 %v1363, 0.5
    %v1365 = vadd.f32 %v1364, 0.5
    %v1366 = vsel %vm76, %v1363, %v1365
    %v1367 = vmul.f32 %v1366, %v1225
    %1369 = vrot.lane.b32.xlu0 %v1366, 64
    %v1370 = vpop.permute.xlu0 %1369
    %v1372 = vmul.f32 %v1366, %v1370
    %1374 = vrot.lane.b32.xlu0 %v1372, 32
    %v1375 = vpop.permute.xlu0 %1374
    %v1377 = vadd.f32 %v1367, %v1375
    %v1378 = vtanh.pop %v1377
    %1380 = vrot.lane.b32.xlu0 %v1378, 64
    %v1381 = vpop.permute.xlu0 %1380
    %v1383 = vmul.f32 %v1366, %v1381
    %v1384 = vpack.c.bf16 %v1383, %v1383
    %v1385 = vld [vmem:[%s6] sm:$0xf]
    %v1386 = vld [vmem:[%s6 + $0x4] sm:$0xf]
    %v1387 = vld [vmem:[%s6 + $0x8] sm:$0xf]
    %v1388 = vld [vmem:[%s6 + $0xc] sm:$0xf]
    %v1389 = vld [vmem:[%s7] sm:$0x1]
    %v1391 = vlaneseq
    %v1392 = vshrl.u32 %v1391, 7
    %v1393 = vsub.s32 0, %v1392
    %v1394 = vrot.slane %v1389, %v1393
    %1397 = vrot.lane.b32.xlu0 %v1384, 32
    %v1398 = vpop.permute.xlu0 %1397
    %v1403 = vunpack.c.l.b16 %v1385
    %v1404 = vunpack.c.l.b16 %v1386
    %v1405 = vunpack.c.l.b16 %v1387
    %v1406 = vunpack.c.l.b16 %v1388
    %v1407 = vpack.c.b16 %v1404, %v1403
    %v1408 = vpack.c.b16 %v1406, %v1405
    %v1412 = vsel %vm169, %v1398, 0
    %1414 = vmatprep.subr.bf16.mxu0 0
    %1415 = vmatpush1.bf16.msra.mxu0 %v1407
    %1416 = vmatprep.subr.bf16.mxu0 0
    %1417 = vmatpush1.bf16.msra.mxu0 %v1408
    %1418 = vmatprep.subr.bf16.mxu0 0
    %1419 = vmatpush1.bf16.msra.mxu0 0
    %1420 = vmatprep.subr.bf16.mxu0 0
    %1421 = vmatpush1.bf16.msra.mxu0 0
    %1422 = vmatprep.subr.bf16.mxu0 0
    %1423 = vmatpush1.bf16.msra.mxu0 0
    %1424 = vmatprep.subr.bf16.mxu0 0
    %1425 = vmatpush1.bf16.msra.mxu0 0
    %1426 = vmatprep.subr.bf16.mxu0 0
    %1427 = vmatpush1.bf16.msra.mxu0 0
    %1428 = vmatprep.subr.bf16.mxu0 0
    %1429 = vmatpush1.bf16.msra.mxu0 0
    %1430 = vmatprep.subr.bf16.mxu0 0
    %1431 = vmatpush1.bf16.msra.mxu0 0
    %1432 = vmatprep.subr.bf16.mxu0 0
    %1433 = vmatpush1.bf16.msra.mxu0 0
    %1434 = vmatprep.subr.bf16.mxu0 0
    %1435 = vmatpush1.bf16.msra.mxu0 0
    %1436 = vmatprep.subr.bf16.mxu0 0
    %1437 = vmatpush1.bf16.msra.mxu0 0
    %1438 = vmatprep.subr.bf16.mxu0 0
    %1439 = vmatpush1.bf16.msra.mxu0 0
    %1440 = vmatprep.subr.bf16.mxu0 0
    %1441 = vmatpush1.bf16.msra.mxu0 0
    %1442 = vmatprep.subr.bf16.mxu0 0
    %1443 = vmatpush1.bf16.msra.mxu0 0
    %1444 = vmatprep.subr.bf16.mxu0 0
    %1445 = vmatpush1.bf16.msra.mxu0 0
    %1446 = vmatprep.mubr.bf16.mxu0 0
    %1447 = vmatmul.mubr.bf16.gmra.mrb[0].mxu0 %v1412
    %v1448 = vpop.f32.mrb[0].mxu0
    %v1449 = vadd.f32 %v1394, %v1448
    %v1450 = vpop.f32.mrb[0].mxu0
    %v1451 = vpop.f32.mrb[0].mxu0
    %v1452 = vpop.f32.mrb[0].mxu0
    %1453 = vdwg.mxu0
    %vm1454 = vcmask 25600
    %1455 = vst.msk [vmem:[#allocation8] sm:$0x3] %vm1454, %v1449
    // Predicated region
    $region46: #{tpu_custom_call.1} parent=1 // pred_check
      _
    $region47: #{tpu_custom_call.1} parent=1 // pred_check_branch
      %1457 = sbr.rel (0) target = $region49
    $region48: #{tpu_custom_call.1} parent=1 // pred_region
      %s1459 = ssub.s32 32, 32
      %1460 = vsyncadd [#allocation4], %s1459
      %s1462 = sshll.u32 [#allocation8], 4
      %s1463 = int_to_ptr.vmem [resolvable:$true] %s1462
      %1465 = dma.vmem_to_hbm [thread:$0]  %s1463, 32, %s8, [#allocation4]
    $region49: #{tpu_custom_call.1} parent=1 // pred_fallthru
      _
    // Predicated region
    $region50: #{tpu_custom_call.1} parent=1 // pred_check
      _
    $region51: #{tpu_custom_call.1} parent=1 // pred_check_branch
      %1467 = sbr.rel (0) target = $region53
    $region52: #{tpu_custom_call.1} parent=1 // pred_region
      %1468 = dma.done [#allocation4], 32
    $region53: #{tpu_custom_call.1} parent=1 // pred_fallthru
      _
    %1469 = vsyncpa [#allocation3], 1
    %1470 = vsyncpa [#allocation6], 1
    %1471 = vsyncpa [#allocation4], 1

</llo_original>
